<compile_context>
chip_gen: v7x
topology: tpu7x:2x2x1
jax: 0.10.0
libtpu: 0.0.40
codegen_flags: <defaults>
</compile_context>

<pallas_src>
import functools

import jax
import jax.numpy as jnp
from jax import lax
from jax.experimental import pallas as pl
from jax.experimental.pallas import tpu as pltpu


def _cls_kernel(x_ref, w1_ref, b1_ref, wfc_ref, bfc_ref,
                logits_ref, reg_ref, *, K, bb):
    """Processes `bb` batch elements per grid step.

    x_ref:      (bb, N, Fin)   points, channels last
    w1_ref:     (K*Fin, Fout)  ChebConv weights (pre-reshaped for the fused GEMM)
    b1_ref:     (1, Fout)
    wfc_ref:    (Fout, Cpad)   final Linear, lane-padded to a multiple of 128
    bfc_ref:    (1, Cpad)
    logits_ref: (bb, Cpad)
    reg_ref:    (bb, 1)        per-sample ||out^T L out||_F^2
    """
    logit_rows = []
    reg_rows = []
    for bi in range(bb):
        x = x_ref[bi].astype(jnp.float32)                       # (N, Fin)

        # ---- pairwise_distance -> adjacency = exp(-dist) -------------------
        sq_col = jnp.sum(x * x, axis=1, keepdims=True)          # (N, 1)
        inner = lax.dot_general(x, x, (((1,), (1,)), ((), ())),
                                preferred_element_type=jnp.float32)   # (N, N)
        adj = jnp.exp(2.0 * inner - sq_col - jnp.transpose(sq_col))   # (N, N)

        # ---- normalized adjacency; L = I - A_norm kept implicit ------------
        d_col = jnp.sum(adj, axis=1, keepdims=True)             # (N, 1)
        dinv_col = lax.rsqrt(d_col)
        dinv_row = jnp.transpose(dinv_col)                      # adj symmetric
        a_norm = (dinv_col * adj) * dinv_row                    # (N, N) f32
        a_bf = a_norm.astype(jnp.bfloat16)                      # bf16 copy for MXU

        def l_apply(v):
            # L @ v = v - A_norm @ v   (bf16 operands, f32 accumulate)
            return v - jnp.dot(a_bf, v.astype(jnp.bfloat16),
                               preferred_element_type=jnp.float32)

        # ---- Chebyshev recursion + fused K-order projection -----------------
        t_prev = x                                              # T_0 x
        t_cur = l_apply(x)                                      # T_1 x
        feats = [t_prev, t_cur]
        for _ in range(2, K):
            t_next = 2.0 * l_apply(t_cur) - t_prev
            feats.append(t_next)
            t_prev, t_cur = t_cur, t_next
        tx = jnp.concatenate(feats, axis=1)                     # (N, K*Fin)
        y = jnp.dot(tx, w1_ref[...],
                    preferred_element_type=jnp.float32) + b1_ref[...]
        out = jnp.maximum(y, 0.0)                               # ReLU, (N, Fout)

        # ---- regularizer || out^T L out ||_F^2 ------------------------------
        out_bf = out.astype(jnp.bfloat16)
        l_out = out - jnp.dot(a_bf, out_bf,
                              preferred_element_type=jnp.float32)     # (N, Fout)
        m = lax.dot_general(out_bf, l_out.astype(jnp.bfloat16),
                            (((0,), (0,)), ((), ())),
                            preferred_element_type=jnp.float32)       # (Fout, Fout)
        reg_rows.append(jnp.sum(m * m, keepdims=True))          # (1, 1)

        # ---- global max-pool over points + final fc --------------------------
        pooled = jnp.max(out, axis=0, keepdims=True)            # (1, Fout)
        logit_rows.append(jnp.dot(pooled, wfc_ref[...],
                                  preferred_element_type=jnp.float32)
                          + bfc_ref[...])                       # (1, Cpad)

    logits_ref[...] = jnp.concatenate(logit_rows, axis=0)       # lane-dense store
    reg_ref[...] = jnp.concatenate(reg_rows, axis=0)


def cls_model_forward(params, x):
    """x: (B, N, Fin) float32. Returns (logits (B, class_num), [regularizer])."""
    B, N, Fin = x.shape
    K, fin_w, Fout = params["w1"].shape
    assert fin_w == Fin
    C = params["wfc"].shape[1]
    Cpad = ((C + 127) // 128) * 128

    # For small point clouds, amortize per-grid-step overhead over several samples.
    if N <= 256:
        bb = next((c for c in (8, 4, 2) if B % c == 0 and c <= B), 1)
    else:
        bb = 1

    w1_flat = params["w1"].reshape(K * Fin, Fout)
    wfc_pad = jnp.pad(params["wfc"], ((0, 0), (0, Cpad - C)))
    bfc_pad = jnp.pad(params["bfc"], ((0, 0), (0, Cpad - C)))

    # Rough VMEM budget: NxN adjacency (f32 + bf16 copy) + (N,Fout) activations per
    # in-flight sample, plus resident weights and double-buffered I/O blocks.
    est = bb * (10 * N * N + 48 * N * Fout + 8 * N * Fin) \
        + 4 * (K * Fin * Fout + Fout * Cpad + Fout + Cpad)
    vmem_limit = int(min(48 * 1024 * 1024, max(32 * 1024 * 1024, 2 * est)))

    kernel = functools.partial(_cls_kernel, K=K, bb=bb)
    logits_pad, reg_b = pl.pallas_call(
        kernel,
        out_shape=(jax.ShapeDtypeStruct((B, Cpad), jnp.float32),
                   jax.ShapeDtypeStruct((B, 1), jnp.float32)),
        grid_spec=pltpu.PrefetchScalarGridSpec(
            num_scalar_prefetch=0,
            grid=(B // bb,),
            in_specs=[
                pl.BlockSpec((bb, N, Fin), lambda b: (b, 0, 0)),      # x
                pl.BlockSpec((K * Fin, Fout), lambda b: (0, 0)),      # W1 (flattened)
                pl.BlockSpec((1, Fout), lambda b: (0, 0)),            # b1
                pl.BlockSpec((Fout, Cpad), lambda b: (0, 0)),         # Wfc (padded)
                pl.BlockSpec((1, Cpad), lambda b: (0, 0)),            # bfc (padded)
            ],
            out_specs=[
                pl.BlockSpec((bb, Cpad), lambda b: (b, 0)),           # logits (padded)
                pl.BlockSpec((bb, 1), lambda b: (b, 0)),              # reg per batch
            ],
        ),
        compiler_params=pltpu.CompilerParams(
            dimension_semantics=("parallel",),
            vmem_limit_bytes=vmem_limit),
    )(x, w1_flat, params["b1"], wfc_pad, bfc_pad)

    logits = logits_pad[:, :C]
    reg = jnp.sum(reg_b)
    return logits, [reg]


def _reference_forward(params, x):
    """Pure-JAX f32 reference for correctness check."""
    K = params["w1"].shape[0]
    sq = jnp.sum(x * x, axis=-1, keepdims=True)                     # (B,N,1)
    inner = jnp.einsum("bnf,bmf->bnm", x, x)
    adj = jnp.exp(-(sq - 2.0 * inner + jnp.swapaxes(sq, 1, 2)))
    d = jnp.sum(adj, axis=2, keepdims=True)
    dinv = 1.0 / jnp.sqrt(d)
    eye = jnp.eye(x.shape[1], dtype=x.dtype)[None]
    L = eye - dinv * adj * jnp.swapaxes(dinv, 1, 2)

    t_prev, t_cur = x, jnp.einsum("bnm,bmf->bnf", L, x)
    y = t_prev @ params["w1"][0] + t_cur @ params["w1"][1]
    for k in range(2, K):
        t_next = 2.0 * jnp.einsum("bnm,bmf->bnf", L, t_cur) - t_prev
        y = y + t_next @ params["w1"][k]
        t_prev, t_cur = t_cur, t_next
    out = jnp.maximum(y + params["b1"], 0.0)                        # (B,N,128)

    M = jnp.einsum("bnf,bnm,bmg->bfg", out, L, out)
    reg = jnp.sum(M * M)

    pooled = jnp.max(out, axis=1)                                   # (B,128)
    logits = pooled @ params["wfc"] + params["bfc"]
    return logits, reg


if __name__ == "__main__":
    B, N, Fin, Fout, K, class_num = 2, 16, 6, 128, 6, 8

    key = jax.random.PRNGKey(0)
    kx, k1, k2, k3, k4 = jax.random.split(key, 5)
    # Point-cloud-like coordinates (moderate pairwise distances -> well-conditioned
    # normalized Laplacian, representative of unit-sphere inputs).
    x = 0.4 * jax.random.normal(kx, (B, N, Fin), dtype=jnp.float32)
    params = {
        "w1":  0.1 * jax.random.normal(k1, (K, Fin, Fout), dtype=jnp.float32),
        "b1":  0.1 * jax.random.normal(k2, (1, Fout), dtype=jnp.float32),
        "wfc": 0.1 * jax.random.normal(k3, (Fout, class_num), dtype=jnp.float32),
        "bfc": 0.1 * jax.random.normal(k4, (1, class_num), dtype=jnp.float32),
    }

    logits, regs = cls_model_forward(params, x)
    logits = jax.block_until_ready(logits)
    reg = jax.block_until_ready(regs[0])

    ref_logits, ref_reg = _reference_forward(params, x)
    # Kernel uses bf16 MXU operands (f32 accumulate) for the dominant matmuls, so
    # compare against the f32 reference with bf16-appropriate tolerances; the
    # regularizer is a squared Frobenius norm, which doubles the relative error.
    assert jnp.allclose(logits, ref_logits, rtol=5e-2, atol=5e-2), "logits mismatch"
    assert jnp.allclose(reg, ref_reg, rtol=2e-1, atol=1e-1), "regularizer mismatch"

    print("KERNEL_OK")
</pallas_src>

<mosaic_0001>
module attributes {stable_mosaic.version = 11 : i64} {
  func.func @_cls_kernel(%arg0: i32, %arg1: memref<2x16x6xf32, #tpu.memory_space<vmem>>, %arg2: memref<36x128xf32, #tpu.memory_space<vmem>>, %arg3: memref<1x128xf32, #tpu.memory_space<vmem>>, %arg4: memref<128x128xf32, #tpu.memory_space<vmem>>, %arg5: memref<1x128xf32, #tpu.memory_space<vmem>>, %arg6: memref<2x128xf32, #tpu.memory_space<vmem>>, %arg7: memref<2x1xf32, #tpu.memory_space<vmem>>) attributes {dimension_semantics = [#tpu.dimension_semantics<parallel>], iteration_bounds = array<i64: 1>, scalar_prefetch = 0 : i64, scratch_operands = 0 : i64, tpu.core_type = #tpu.core_type<tc>, window_params = [{transform_indices = @transform_0, window_bounds = array<i64: 2, 16, 6>}, {pipeline_mode = #tpu.pipeline_mode<synchronous>, transform_indices = @transform_1, window_bounds = array<i64: 36, 128>}, {pipeline_mode = #tpu.pipeline_mode<synchronous>, transform_indices = @transform_2, window_bounds = array<i64: 1, 128>}, {pipeline_mode = #tpu.pipeline_mode<synchronous>, transform_indices = @transform_3, window_bounds = array<i64: 128, 128>}, {pipeline_mode = #tpu.pipeline_mode<synchronous>, transform_indices = @transform_4, window_bounds = array<i64: 1, 128>}, {transform_indices = @transform_5, window_bounds = array<i64: 2, 128>}, {transform_indices = @transform_6, window_bounds = array<i64: 2, 1>}]} {
    %c0 = arith.constant 0 : index
    %c0_0 = arith.constant 0 : index
    %c0_1 = arith.constant 0 : index
    %0 = vector.load %arg1[%c0, %c0_0, %c0_1] : memref<2x16x6xf32, #tpu.memory_space<vmem>>, vector<1x16x6xf32>
    %1 = vector.shape_cast %0 : vector<1x16x6xf32> to vector<16x6xf32>
    %2 = arith.mulf %1, %1 : vector<16x6xf32>
    %cst = arith.constant dense<0.000000e+00> : vector<16xf32>
    %3 = vector.multi_reduction <add>, %2, %cst [1] : vector<16x6xf32> to vector<16xf32>
    %4 = vector.shape_cast %3 : vector<16xf32> to vector<16x1xf32>
    %cst_2 = arith.constant dense<0.000000e+00> : vector<16x16xf32>
    %5 = tpu.matmul %1, %1, %cst_2 {dimension_numbers = #tpu.dot_dimension_numbers<[1], [1], [0], [0], [0, 0, 1, 0], [], []>} : vector<16x6xf32>, vector<16x6xf32>, vector<16x16xf32> -> vector<16x16xf32>
    %cst_3 = arith.constant 2.000000e+00 : f32
    %6 = vector.broadcast %cst_3 : f32 to vector<16x16xf32>
    %7 = arith.mulf %6, %5 : vector<16x16xf32>
    %8 = vector.broadcast %4 : vector<16x1xf32> to vector<16x16xf32>
    %9 = arith.subf %7, %8 : vector<16x16xf32>
    %10 = tpu.transpose %4, [1, 0] : vector<16x1xf32> -> vector<1x16xf32>
    %11 = vector.broadcast %10 : vector<1x16xf32> to vector<16x16xf32>
    %12 = arith.subf %9, %11 : vector<16x16xf32>
    %13 = math.exp %12 : vector<16x16xf32>
    %cst_4 = arith.constant dense<0.000000e+00> : vector<16xf32>
    %14 = vector.multi_reduction <add>, %13, %cst_4 [1] : vector<16x16xf32> to vector<16xf32>
    %15 = vector.shape_cast %14 : vector<16xf32> to vector<16x1xf32>
    %16 = math.rsqrt %15 : vector<16x1xf32>
    %17 = tpu.transpose %16, [1, 0] : vector<16x1xf32> -> vector<1x16xf32>
    %18 = vector.broadcast %16 : vector<16x1xf32> to vector<16x16xf32>
    %19 = arith.mulf %18, %13 : vector<16x16xf32>
    %20 = vector.broadcast %17 : vector<1x16xf32> to vector<16x16xf32>
    %21 = arith.mulf %19, %20 : vector<16x16xf32>
    %22 = arith.truncf %21 : vector<16x16xf32> to vector<16x16xbf16>
    %23 = arith.truncf %1 : vector<16x6xf32> to vector<16x6xbf16>
    %cst_5 = arith.constant dense<0.000000e+00> : vector<16x6xf32>
    %24 = tpu.matmul %22, %23, %cst_5 {dimension_numbers = #tpu.dot_dimension_numbers<[1], [0], [0], [1], [0, 0, 1, 1], [], []>} : vector<16x16xbf16>, vector<16x6xbf16>, vector<16x6xf32> -> vector<16x6xf32>
    %25 = arith.subf %1, %24 : vector<16x6xf32>
    %26 = arith.truncf %25 : vector<16x6xf32> to vector<16x6xbf16>
    %cst_6 = arith.constant dense<0.000000e+00> : vector<16x6xf32>
    %27 = tpu.matmul %22, %26, %cst_6 {dimension_numbers = #tpu.dot_dimension_numbers<[1], [0], [0], [1], [0, 0, 1, 1], [], []>} : vector<16x16xbf16>, vector<16x6xbf16>, vector<16x6xf32> -> vector<16x6xf32>
    %28 = arith.subf %25, %27 : vector<16x6xf32>
    %cst_7 = arith.constant 2.000000e+00 : f32
    %29 = vector.broadcast %cst_7 : f32 to vector<16x6xf32>
    %30 = arith.mulf %29, %28 : vector<16x6xf32>
    %31 = arith.subf %30, %1 : vector<16x6xf32>
    %32 = arith.truncf %31 : vector<16x6xf32> to vector<16x6xbf16>
    %cst_8 = arith.constant dense<0.000000e+00> : vector<16x6xf32>
    %33 = tpu.matmul %22, %32, %cst_8 {dimension_numbers = #tpu.dot_dimension_numbers<[1], [0], [0], [1], [0, 0, 1, 1], [], []>} : vector<16x16xbf16>, vector<16x6xbf16>, vector<16x6xf32> -> vector<16x6xf32>
    %34 = arith.subf %31, %33 : vector<16x6xf32>
    %cst_9 = arith.constant 2.000000e+00 : f32
    %35 = vector.broadcast %cst_9 : f32 to vector<16x6xf32>
    %36 = arith.mulf %35, %34 : vector<16x6xf32>
    %37 = arith.subf %36, %25 : vector<16x6xf32>
    %38 = arith.truncf %37 : vector<16x6xf32> to vector<16x6xbf16>
    %cst_10 = arith.constant dense<0.000000e+00> : vector<16x6xf32>
    %39 = tpu.matmul %22, %38, %cst_10 {dimension_numbers = #tpu.dot_dimension_numbers<[1], [0], [0], [1], [0, 0, 1, 1], [], []>} : vector<16x16xbf16>, vector<16x6xbf16>, vector<16x6xf32> -> vector<16x6xf32>
    %40 = arith.subf %37, %39 : vector<16x6xf32>
    %cst_11 = arith.constant 2.000000e+00 : f32
    %41 = vector.broadcast %cst_11 : f32 to vector<16x6xf32>
    %42 = arith.mulf %41, %40 : vector<16x6xf32>
    %43 = arith.subf %42, %31 : vector<16x6xf32>
    %44 = arith.truncf %43 : vector<16x6xf32> to vector<16x6xbf16>
    %cst_12 = arith.constant dense<0.000000e+00> : vector<16x6xf32>
    %45 = tpu.matmul %22, %44, %cst_12 {dimension_numbers = #tpu.dot_dimension_numbers<[1], [0], [0], [1], [0, 0, 1, 1], [], []>} : vector<16x16xbf16>, vector<16x6xbf16>, vector<16x6xf32> -> vector<16x6xf32>
    %46 = arith.subf %43, %45 : vector<16x6xf32>
    %cst_13 = arith.constant 2.000000e+00 : f32
    %47 = vector.broadcast %cst_13 : f32 to vector<16x6xf32>
    %48 = arith.mulf %47, %46 : vector<16x6xf32>
    %49 = arith.subf %48, %37 : vector<16x6xf32>
    %50 = tpu.concatenate %1, %25, %31, %37, %43, %49 in 1 : vector<16x6xf32>, vector<16x6xf32>, vector<16x6xf32>, vector<16x6xf32>, vector<16x6xf32>, vector<16x6xf32> -> vector<16x36xf32>
    %c0_14 = arith.constant 0 : index
    %c0_15 = arith.constant 0 : index
    %51 = vector.load %arg2[%c0_14, %c0_15] : memref<36x128xf32, #tpu.memory_space<vmem>>, vector<36x128xf32>
    %cst_16 = arith.constant dense<0.000000e+00> : vector<16x128xf32>
    %52 = tpu.matmul %50, %51, %cst_16 {dimension_numbers = #tpu.dot_dimension_numbers<[1], [0], [0], [1], [0, 0, 1, 1], [], []>} : vector<16x36xf32>, vector<36x128xf32>, vector<16x128xf32> -> vector<16x128xf32>
    %c0_17 = arith.constant 0 : index
    %c0_18 = arith.constant 0 : index
    %53 = vector.load %arg3[%c0_17, %c0_18] : memref<1x128xf32, #tpu.memory_space<vmem>>, vector<1x128xf32>
    %54 = vector.broadcast %53 : vector<1x128xf32> to vector<16x128xf32>
    %55 = arith.addf %52, %54 : vector<16x128xf32>
    %cst_19 = arith.constant 0.000000e+00 : f32
    %56 = vector.broadcast %cst_19 : f32 to vector<16x128xf32>
    %57 = arith.maximumf %55, %56 : vector<16x128xf32>
    %58 = arith.truncf %57 : vector<16x128xf32> to vector<16x128xbf16>
    %cst_20 = arith.constant dense<0.000000e+00> : vector<16x128xf32>
    %59 = tpu.matmul %22, %58, %cst_20 {dimension_numbers = #tpu.dot_dimension_numbers<[1], [0], [0], [1], [0, 0, 1, 1], [], []>} : vector<16x16xbf16>, vector<16x128xbf16>, vector<16x128xf32> -> vector<16x128xf32>
    %60 = arith.subf %57, %59 : vector<16x128xf32>
    %61 = arith.truncf %60 : vector<16x128xf32> to vector<16x128xbf16>
    %cst_21 = arith.constant dense<0.000000e+00> : vector<128x128xf32>
    %62 = tpu.matmul %58, %61, %cst_21 {dimension_numbers = #tpu.dot_dimension_numbers<[0], [0], [1], [1], [0, 1, 1, 1], [], []>} : vector<16x128xbf16>, vector<16x128xbf16>, vector<128x128xf32> -> vector<128x128xf32>
    %63 = arith.mulf %62, %62 : vector<128x128xf32>
    %64 = vector.shape_cast %63 : vector<128x128xf32> to vector<1x128x128xf32>
    %cst_22 = arith.constant dense<0.000000e+00> : vector<1xf32>
    %65 = vector.multi_reduction <add>, %64, %cst_22 [1, 2] : vector<1x128x128xf32> to vector<1xf32>
    %66 = vector.shape_cast %65 : vector<1xf32> to vector<1x1x1xf32>
    %67 = vector.extract %66[0, 0, 0] : f32 from vector<1x1x1xf32>
    %68 = vector.broadcast %67 : f32 to vector<1x1xf32>
    %cst_23 = arith.constant dense<0xFF800000> : vector<128xf32>
    %69 = vector.multi_reduction <maximumf>, %57, %cst_23 [0] : vector<16x128xf32> to vector<128xf32>
    %70 = vector.shape_cast %69 : vector<128xf32> to vector<1x128xf32>
    %c0_24 = arith.constant 0 : index
    %c0_25 = arith.constant 0 : index
    %71 = vector.load %arg4[%c0_24, %c0_25] : memref<128x128xf32, #tpu.memory_space<vmem>>, vector<128x128xf32>
    %cst_26 = arith.constant dense<0.000000e+00> : vector<1x128xf32>
    %72 = tpu.matmul %70, %71, %cst_26 {dimension_numbers = #tpu.dot_dimension_numbers<[1], [0], [0], [1], [0, 0, 1, 1], [], []>} : vector<1x128xf32>, vector<128x128xf32>, vector<1x128xf32> -> vector<1x128xf32>
    %c0_27 = arith.constant 0 : index
    %c0_28 = arith.constant 0 : index
    %73 = vector.load %arg5[%c0_27, %c0_28] : memref<1x128xf32, #tpu.memory_space<vmem>>, vector<1x128xf32>
    %74 = arith.addf %72, %73 : vector<1x128xf32>
    %c1 = arith.constant 1 : index
    %c0_29 = arith.constant 0 : index
    %c0_30 = arith.constant 0 : index
    %75 = vector.load %arg1[%c1, %c0_29, %c0_30] : memref<2x16x6xf32, #tpu.memory_space<vmem>>, vector<1x16x6xf32>
    %76 = vector.shape_cast %75 : vector<1x16x6xf32> to vector<16x6xf32>
    %77 = arith.mulf %76, %76 : vector<16x6xf32>
    %cst_31 = arith.constant dense<0.000000e+00> : vector<16xf32>
    %78 = vector.multi_reduction <add>, %77, %cst_31 [1] : vector<16x6xf32> to vector<16xf32>
    %79 = vector.shape_cast %78 : vector<16xf32> to vector<16x1xf32>
    %cst_32 = arith.constant dense<0.000000e+00> : vector<16x16xf32>
    %80 = tpu.matmul %76, %76, %cst_32 {dimension_numbers = #tpu.dot_dimension_numbers<[1], [1], [0], [0], [0, 0, 1, 0], [], []>} : vector<16x6xf32>, vector<16x6xf32>, vector<16x16xf32> -> vector<16x16xf32>
    %cst_33 = arith.constant 2.000000e+00 : f32
    %81 = vector.broadcast %cst_33 : f32 to vector<16x16xf32>
    %82 = arith.mulf %81, %80 : vector<16x16xf32>
    %83 = vector.broadcast %79 : vector<16x1xf32> to vector<16x16xf32>
    %84 = arith.subf %82, %83 : vector<16x16xf32>
    %85 = tpu.transpose %79, [1, 0] : vector<16x1xf32> -> vector<1x16xf32>
    %86 = vector.broadcast %85 : vector<1x16xf32> to vector<16x16xf32>
    %87 = arith.subf %84, %86 : vector<16x16xf32>
    %88 = math.exp %87 : vector<16x16xf32>
    %cst_34 = arith.constant dense<0.000000e+00> : vector<16xf32>
    %89 = vector.multi_reduction <add>, %88, %cst_34 [1] : vector<16x16xf32> to vector<16xf32>
    %90 = vector.shape_cast %89 : vector<16xf32> to vector<16x1xf32>
    %91 = math.rsqrt %90 : vector<16x1xf32>
    %92 = tpu.transpose %91, [1, 0] : vector<16x1xf32> -> vector<1x16xf32>
    %93 = vector.broadcast %91 : vector<16x1xf32> to vector<16x16xf32>
    %94 = arith.mulf %93, %88 : vector<16x16xf32>
    %95 = vector.broadcast %92 : vector<1x16xf32> to vector<16x16xf32>
    %96 = arith.mulf %94, %95 : vector<16x16xf32>
    %97 = arith.truncf %96 : vector<16x16xf32> to vector<16x16xbf16>
    %98 = arith.truncf %76 : vector<16x6xf32> to vector<16x6xbf16>
    %cst_35 = arith.constant dense<0.000000e+00> : vector<16x6xf32>
    %99 = tpu.matmul %97, %98, %cst_35 {dimension_numbers = #tpu.dot_dimension_numbers<[1], [0], [0], [1], [0, 0, 1, 1], [], []>} : vector<16x16xbf16>, vector<16x6xbf16>, vector<16x6xf32> -> vector<16x6xf32>
    %100 = arith.subf %76, %99 : vector<16x6xf32>
    %101 = arith.truncf %100 : vector<16x6xf32> to vector<16x6xbf16>
    %cst_36 = arith.constant dense<0.000000e+00> : vector<16x6xf32>
    %102 = tpu.matmul %97, %101, %cst_36 {dimension_numbers = #tpu.dot_dimension_numbers<[1], [0], [0], [1], [0, 0, 1, 1], [], []>} : vector<16x16xbf16>, vector<16x6xbf16>, vector<16x6xf32> -> vector<16x6xf32>
    %103 = arith.subf %100, %102 : vector<16x6xf32>
    %cst_37 = arith.constant 2.000000e+00 : f32
    %104 = vector.broadcast %cst_37 : f32 to vector<16x6xf32>
    %105 = arith.mulf %104, %103 : vector<16x6xf32>
    %106 = arith.subf %105, %76 : vector<16x6xf32>
    %107 = arith.truncf %106 : vector<16x6xf32> to vector<16x6xbf16>
    %cst_38 = arith.constant dense<0.000000e+00> : vector<16x6xf32>
    %108 = tpu.matmul %97, %107, %cst_38 {dimension_numbers = #tpu.dot_dimension_numbers<[1], [0], [0], [1], [0, 0, 1, 1], [], []>} : vector<16x16xbf16>, vector<16x6xbf16>, vector<16x6xf32> -> vector<16x6xf32>
    %109 = arith.subf %106, %108 : vector<16x6xf32>
    %cst_39 = arith.constant 2.000000e+00 : f32
    %110 = vector.broadcast %cst_39 : f32 to vector<16x6xf32>
    %111 = arith.mulf %110, %109 : vector<16x6xf32>
    %112 = arith.subf %111, %100 : vector<16x6xf32>
    %113 = arith.truncf %112 : vector<16x6xf32> to vector<16x6xbf16>
    %cst_40 = arith.constant dense<0.000000e+00> : vector<16x6xf32>
    %114 = tpu.matmul %97, %113, %cst_40 {dimension_numbers = #tpu.dot_dimension_numbers<[1], [0], [0], [1], [0, 0, 1, 1], [], []>} : vector<16x16xbf16>, vector<16x6xbf16>, vector<16x6xf32> -> vector<16x6xf32>
    %115 = arith.subf %112, %114 : vector<16x6xf32>
    %cst_41 = arith.constant 2.000000e+00 : f32
    %116 = vector.broadcast %cst_41 : f32 to vector<16x6xf32>
    %117 = arith.mulf %116, %115 : vector<16x6xf32>
    %118 = arith.subf %117, %106 : vector<16x6xf32>
    %119 = arith.truncf %118 : vector<16x6xf32> to vector<16x6xbf16>
    %cst_42 = arith.constant dense<0.000000e+00> : vector<16x6xf32>
    %120 = tpu.matmul %97, %119, %cst_42 {dimension_numbers = #tpu.dot_dimension_numbers<[1], [0], [0], [1], [0, 0, 1, 1], [], []>} : vector<16x16xbf16>, vector<16x6xbf16>, vector<16x6xf32> -> vector<16x6xf32>
    %121 = arith.subf %118, %120 : vector<16x6xf32>
    %cst_43 = arith.constant 2.000000e+00 : f32
    %122 = vector.broadcast %cst_43 : f32 to vector<16x6xf32>
    %123 = arith.mulf %122, %121 : vector<16x6xf32>
    %124 = arith.subf %123, %112 : vector<16x6xf32>
    %125 = tpu.concatenate %76, %100, %106, %112, %118, %124 in 1 : vector<16x6xf32>, vector<16x6xf32>, vector<16x6xf32>, vector<16x6xf32>, vector<16x6xf32>, vector<16x6xf32> -> vector<16x36xf32>
    %c0_44 = arith.constant 0 : index
    %c0_45 = arith.constant 0 : index
    %126 = vector.load %arg2[%c0_44, %c0_45] : memref<36x128xf32, #tpu.memory_space<vmem>>, vector<36x128xf32>
    %cst_46 = arith.constant dense<0.000000e+00> : vector<16x128xf32>
    %127 = tpu.matmul %125, %126, %cst_46 {dimension_numbers = #tpu.dot_dimension_numbers<[1], [0], [0], [1], [0, 0, 1, 1], [], []>} : vector<16x36xf32>, vector<36x128xf32>, vector<16x128xf32> -> vector<16x128xf32>
    %c0_47 = arith.constant 0 : index
    %c0_48 = arith.constant 0 : index
    %128 = vector.load %arg3[%c0_47, %c0_48] : memref<1x128xf32, #tpu.memory_space<vmem>>, vector<1x128xf32>
    %129 = vector.broadcast %128 : vector<1x128xf32> to vector<16x128xf32>
    %130 = arith.addf %127, %129 : vector<16x128xf32>
    %cst_49 = arith.constant 0.000000e+00 : f32
    %131 = vector.broadcast %cst_49 : f32 to vector<16x128xf32>
    %132 = arith.maximumf %130, %131 : vector<16x128xf32>
    %133 = arith.truncf %132 : vector<16x128xf32> to vector<16x128xbf16>
    %cst_50 = arith.constant dense<0.000000e+00> : vector<16x128xf32>
    %134 = tpu.matmul %97, %133, %cst_50 {dimension_numbers = #tpu.dot_dimension_numbers<[1], [0], [0], [1], [0, 0, 1, 1], [], []>} : vector<16x16xbf16>, vector<16x128xbf16>, vector<16x128xf32> -> vector<16x128xf32>
    %135 = arith.subf %132, %134 : vector<16x128xf32>
    %136 = arith.truncf %135 : vector<16x128xf32> to vector<16x128xbf16>
    %cst_51 = arith.constant dense<0.000000e+00> : vector<128x128xf32>
    %137 = tpu.matmul %133, %136, %cst_51 {dimension_numbers = #tpu.dot_dimension_numbers<[0], [0], [1], [1], [0, 1, 1, 1], [], []>} : vector<16x128xbf16>, vector<16x128xbf16>, vector<128x128xf32> -> vector<128x128xf32>
    %138 = arith.mulf %137, %137 : vector<128x128xf32>
    %139 = vector.shape_cast %138 : vector<128x128xf32> to vector<1x128x128xf32>
    %cst_52 = arith.constant dense<0.000000e+00> : vector<1xf32>
    %140 = vector.multi_reduction <add>, %139, %cst_52 [1, 2] : vector<1x128x128xf32> to vector<1xf32>
    %141 = vector.shape_cast %140 : vector<1xf32> to vector<1x1x1xf32>
    %142 = vector.extract %141[0, 0, 0] : f32 from vector<1x1x1xf32>
    %143 = vector.broadcast %142 : f32 to vector<1x1xf32>
    %cst_53 = arith.constant dense<0xFF800000> : vector<128xf32>
    %144 = vector.multi_reduction <maximumf>, %132, %cst_53 [0] : vector<16x128xf32> to vector<128xf32>
    %145 = vector.shape_cast %144 : vector<128xf32> to vector<1x128xf32>
    %c0_54 = arith.constant 0 : index
    %c0_55 = arith.constant 0 : index
    %146 = vector.load %arg4[%c0_54, %c0_55] : memref<128x128xf32, #tpu.memory_space<vmem>>, vector<128x128xf32>
    %cst_56 = arith.constant dense<0.000000e+00> : vector<1x128xf32>
    %147 = tpu.matmul %145, %146, %cst_56 {dimension_numbers = #tpu.dot_dimension_numbers<[1], [0], [0], [1], [0, 0, 1, 1], [], []>} : vector<1x128xf32>, vector<128x128xf32>, vector<1x128xf32> -> vector<1x128xf32>
    %c0_57 = arith.constant 0 : index
    %c0_58 = arith.constant 0 : index
    %148 = vector.load %arg5[%c0_57, %c0_58] : memref<1x128xf32, #tpu.memory_space<vmem>>, vector<1x128xf32>
    %149 = arith.addf %147, %148 : vector<1x128xf32>
    %150 = tpu.concatenate %74, %149 in 0 : vector<1x128xf32>, vector<1x128xf32> -> vector<2x128xf32>
    %c0_59 = arith.constant 0 : index
    %c0_60 = arith.constant 0 : index
    %151 = vector.load %arg6[%c0_59, %c0_60] : memref<2x128xf32, #tpu.memory_space<vmem>>, vector<2x128xf32>
    tpu.vector_store %arg6[%c0_59, %c0_60], %150 {strides = array<i32>} : memref<2x128xf32, #tpu.memory_space<vmem>>, vector<2x128xf32>,
    %152 = tpu.concatenate %68, %143 in 0 : vector<1x1xf32>, vector<1x1xf32> -> vector<2x1xf32>
    %c0_61 = arith.constant 0 : index
    %c0_62 = arith.constant 0 : index
    %153 = vector.load %arg7[%c0_61, %c0_62] : memref<2x1xf32, #tpu.memory_space<vmem>>, vector<2x1xf32>
    tpu.vector_store %arg7[%c0_61, %c0_62], %152 {strides = array<i32>} : memref<2x1xf32, #tpu.memory_space<vmem>>, vector<2x1xf32>,
    return
  }
  func.func @transform_0(%arg0: i32) -> (i32, i32, i32) {
    %c0_i32 = arith.constant 0 : i32
    %c0_i32_0 = arith.constant 0 : i32
    %c0_i32_1 = arith.constant 0 : i32
    return %arg0, %c0_i32, %c0_i32_0 : i32, i32, i32
  }
  func.func @transform_1(%arg0: i32) -> (i32, i32) {
    %c0_i32 = arith.constant 0 : i32
    %c0_i32_0 = arith.constant 0 : i32
    %c0_i32_1 = arith.constant 0 : i32
    return %c0_i32, %c0_i32_0 : i32, i32
  }
  func.func @transform_2(%arg0: i32) -> (i32, i32) {
    %c0_i32 = arith.constant 0 : i32
    %c0_i32_0 = arith.constant 0 : i32
    %c0_i32_1 = arith.constant 0 : i32
    return %c0_i32, %c0_i32_0 : i32, i32
  }
  func.func @transform_3(%arg0: i32) -> (i32, i32) {
    %c0_i32 = arith.constant 0 : i32
    %c0_i32_0 = arith.constant 0 : i32
    %c0_i32_1 = arith.constant 0 : i32
    return %c0_i32, %c0_i32_0 : i32, i32
  }
  func.func @transform_4(%arg0: i32) -> (i32, i32) {
    %c0_i32 = arith.constant 0 : i32
    %c0_i32_0 = arith.constant 0 : i32
    %c0_i32_1 = arith.constant 0 : i32
    return %c0_i32, %c0_i32_0 : i32, i32
  }
  func.func @transform_5(%arg0: i32) -> (i32, i32) {
    %c0_i32 = arith.constant 0 : i32
    %c0_i32_0 = arith.constant 0 : i32
    return %arg0, %c0_i32 : i32, i32
  }
  func.func @transform_6(%arg0: i32) -> (i32, i32) {
    %c0_i32 = arith.constant 0 : i32
    %c0_i32_0 = arith.constant 0 : i32
    return %arg0, %c0_i32 : i32, i32
  }
}

</mosaic_0001>

<llo_original>
// kernel: tpu_custom_call.1
$region0: #{tpu_custom_call.1}
  #allocation0 [shape = 'u32[]', space=smem, size = 0x4, offset = 0x4, fixed_abs, tag = 'smem constant byte address 0x4 - core index']
  #allocation1 [shape = 'u32[144,128]{1,0:T(1,128)}', space=vmem, size = 0x12000, scoped, tag = 'internal scratch']
  %s0 = inlined_call_operand.vmem [shape: f32[2,16,6], index: 0, kind: input, shape index: {}]
  %s1 = inlined_call_operand.vmem [shape: f32[36,128], index: 1, kind: input, shape index: {}]
  %s2 = inlined_call_operand.vmem [shape: f32[1,128], index: 2, kind: input, shape index: {}]
  %s3 = inlined_call_operand.hbm [shape: f32[128,128], index: 3, kind: input, shape index: {}]
  %s4 = inlined_call_operand.vmem [shape: f32[1,128], index: 4, kind: input, shape index: {}]
  %s5 = inlined_call_operand.hbm [shape: f32[2,128], index: 5, kind: output, shape index: {0}]
  %s6 = inlined_call_operand.vmem [shape: f32[2,1], index: 6, kind: output, shape index: {1}]
  %7 = xla_tuple %s5, %s6
  %s8 = sld [smem:[#allocation0]]
  $region42: #{tpu_custom_call.1} parent=0
    _
  %s10 = ssub.s32 1, %s8
  %s11 = scalar_select 0, %s10, %s8
  $region1: #{tpu_custom_call.1} parent=0
    #allocation2 [shape = 'u8[65536]{0}', space=vmem, size = 0x10000, scoped, tag = 'input window, operand 3, single buffered']
    #allocation3 [shape = 's32[1]{0}', space=sflag, size = 0x4, scoped, tag = 'scoped memory for tpu_custom_call.1']
    #allocation4 [shape = 's32[1]{0}', space=sflag, size = 0x4, scoped, tag = 'scoped memory for tpu_custom_call.1']
    #allocation5 [shape = 'u8[1024]{0}', space=vmem, size = 0x400, scoped, tag = 'output window, operand 0, single buffered']
    %12 = vsyncpa [#allocation3], 0
    %13 = vsyncpa [#allocation4], 0
    // Predicated region
    $region2: #{tpu_custom_call.1} parent=1 // pred_check
      _
    $region3: #{tpu_custom_call.1} parent=1 // pred_check_branch
      %15 = sbr.rel (0) target = $region5
    $region4: #{tpu_custom_call.1} parent=1 // pred_region
      _
    $region5: #{tpu_custom_call.1} parent=1 // pred_fallthru
      _
    // Predicated region
    $region6: #{tpu_custom_call.1} parent=1 // pred_check
      _
    $region7: #{tpu_custom_call.1} parent=1 // pred_check_branch
      %17 = sbr.rel (0) target = $region9
    $region8: #{tpu_custom_call.1} parent=1 // pred_region
      _
    $region9: #{tpu_custom_call.1} parent=1 // pred_fallthru
      _
    // Predicated region
    $region10: #{tpu_custom_call.1} parent=1 // pred_check
      _
    $region11: #{tpu_custom_call.1} parent=1 // pred_check_branch
      %19 = sbr.rel (0) target = $region13
    $region12: #{tpu_custom_call.1} parent=1 // pred_region
      _
    $region13: #{tpu_custom_call.1} parent=1 // pred_fallthru
      _
    // Predicated region
    $region14: #{tpu_custom_call.1} parent=1 // pred_check
      _
    $region15: #{tpu_custom_call.1} parent=1 // pred_check_branch
      %21 = sbr.rel (0) target = $region17
    $region16: #{tpu_custom_call.1} parent=1 // pred_region
      %s23 = ssub.s32 2048, 2048
      %24 = vsyncadd [#allocation3], %s23
      %s25 = sshll.u32 [#allocation2], 4
      %s26 = int_to_ptr.vmem [resolvable:$true] %s25
      %31 = dma.hbm_to_vmem [thread:$0]  %s3, 2048, %s26, [#allocation3], 128, 128, 8
    $region17: #{tpu_custom_call.1} parent=1 // pred_fallthru
      _
    // Predicated region
    $region18: #{tpu_custom_call.1} parent=1 // pred_check
      _
    $region19: #{tpu_custom_call.1} parent=1 // pred_check_branch
      %33 = sbr.rel (0) target = $region21
    $region20: #{tpu_custom_call.1} parent=1 // pred_region
      _
    $region21: #{tpu_custom_call.1} parent=1 // pred_fallthru
      _
    // Predicated region
    $region22: #{tpu_custom_call.1} parent=1 // pred_check
      _
    $region23: #{tpu_custom_call.1} parent=1 // pred_check_branch
      %35 = sbr.rel (0) target = $region25
    $region24: #{tpu_custom_call.1} parent=1 // pred_region
      %36 = dma.done [#allocation3], 2048
    $region25: #{tpu_custom_call.1} parent=1 // pred_fallthru
      _
    %v38 = vld [vmem:[%s0] sm:$0xff]
    %v39 = vld [vmem:[%s0 + $0x8] sm:$0xff]
    %v40 = vmul.f32 %v38, %v38
    %v41 = vmul.f32 %v39, %v39
    %vm42 = vcmask 48128
    %v43 = vsel %vm42, %v40, 0.0
    %44 = vadd.xlane.f32.xlu0 %v43
    %v45 = vpop.xlane.xlu0 %44
    %v46 = vsel %vm42, %v41, 0.0
    %47 = vadd.xlane.f32.xlu0 %v46
    %v48 = vpop.xlane.xlu0 %47
    %v50 = vsel %vm42, %v38, 0
    %v53 = vsel %vm42, %v39, 0
    %55 = vmatprep.subr.mxu0 0.0
    %56 = vmatpush1.xpose.msra.mxu0 %v50
    %57 = vmatprep.subr.mxu0 0.0
    %58 = vmatpush1.xpose.msra.mxu0 %v53
    %59 = vmatprep.subr.mxu0 0.0
    %60 = vmatpush1.xpose.msra.mxu0 0.0
    %61 = vmatprep.subr.mxu0 0.0
    %62 = vmatpush1.xpose.msra.mxu0 0.0
    %63 = vmatprep.subr.mxu0 0.0
    %64 = vmatpush1.xpose.msra.mxu0 0.0
    %65 = vmatprep.subr.mxu0 0.0
    %66 = vmatpush1.xpose.msra.mxu0 0.0
    %67 = vmatprep.subr.mxu0 0.0
    %68 = vmatpush1.xpose.msra.mxu0 0.0
    %69 = vmatprep.subr.mxu0 0.0
    %70 = vmatpush1.xpose.msra.mxu0 0.0
    %71 = vmatprep.subr.mxu0 0.0
    %72 = vmatpush1.xpose.msra.mxu0 0.0
    %73 = vmatprep.subr.mxu0 0.0
    %74 = vmatpush1.xpose.msra.mxu0 0.0
    %75 = vmatprep.subr.mxu0 0.0
    %76 = vmatpush1.xpose.msra.mxu0 0.0
    %77 = vmatprep.subr.mxu0 0.0
    %78 = vmatpush1.xpose.msra.mxu0 0.0
    %79 = vmatprep.subr.mxu0 0.0
    %80 = vmatpush1.xpose.msra.mxu0 0.0
    %81 = vmatprep.subr.mxu0 0.0
    %82 = vmatpush1.xpose.msra.mxu0 0.0
    %83 = vmatprep.subr.mxu0 0.0
    %84 = vmatpush1.xpose.msra.mxu0 0.0
    %85 = vmatprep.subr.mxu0 0.0
    %86 = vmatpush1.xpose.msra.mxu0 0.0
    %87 = vmatprep.subr.mxu0 0.0
    %88 = vmatpush1.xpose.msra.mxu0 0.0
    %89 = vmatprep.subr.mxu0 0.0
    %90 = vmatpush1.xpose.msra.mxu0 0.0
    %91 = vmatprep.subr.mxu0 0.0
    %92 = vmatpush1.xpose.msra.mxu0 0.0
    %93 = vmatprep.subr.mxu0 0.0
    %94 = vmatpush1.xpose.msra.mxu0 0.0
    %95 = vmatprep.subr.mxu0 0.0
    %96 = vmatpush1.xpose.msra.mxu0 0.0
    %97 = vmatprep.subr.mxu0 0.0
    %98 = vmatpush1.xpose.msra.mxu0 0.0
    %99 = vmatprep.subr.mxu0 0.0
    %100 = vmatpush1.xpose.msra.mxu0 0.0
    %101 = vmatprep.subr.mxu0 0.0
    %102 = vmatpush1.xpose.msra.mxu0 0.0
    %103 = vmatprep.subr.mxu0 0.0
    %104 = vmatpush1.xpose.msra.mxu0 0.0
    %105 = vmatprep.subr.mxu0 0.0
    %106 = vmatpush1.xpose.msra.mxu0 0.0
    %107 = vmatprep.subr.mxu0 0.0
    %108 = vmatpush1.xpose.msra.mxu0 0.0
    %109 = vmatprep.subr.mxu0 0.0
    %110 = vmatpush1.xpose.msra.mxu0 0.0
    %111 = vmatprep.subr.mxu0 0.0
    %112 = vmatpush1.xpose.msra.mxu0 0.0
    %113 = vmatprep.subr.mxu0 0.0
    %114 = vmatpush1.xpose.msra.mxu0 0.0
    %115 = vmatprep.subr.mxu0 0.0
    %116 = vmatpush1.xpose.msra.mxu0 0.0
    %117 = vmatprep.subr.mxu0 0.0
    %118 = vmatpush1.xpose.msra.mxu0 0.0
    %119 = vmatprep.mubr.f32.mxu0 0.0
    %120 = vmatmul.mubr.f32.gmra.mrb[0].mxu0 %v50
    %v121 = vpop.f32.mrb[0].mxu0
    %v122 = vadd.f32 0.0, %v121
    %v123 = vpop.f32.mrb[0].mxu0
    %124 = vmatprep.mubr.f32.mxu0 0.0
    %125 = vmatmul.mubr.f32.gmra.mrb[0].mxu0 %v53
    %v126 = vpop.f32.mrb[0].mxu0
    %v127 = vadd.f32 0.0, %v126
    %v128 = vpop.f32.mrb[0].mxu0
    %129 = vdwg.mxu0
    %v130 = vmul.f32 %v122, 2.0
    %v131 = vmul.f32 %v127, 2.0
    %v132 = vsub.f32 %v130, %v45
    %v133 = vsub.f32 %v131, %v48
    %134 = vxpose.xlu0.b32.start [1/16] %v45, 128
    %135 = vxpose.xlu0.b32.cont [2/16] %v48, 128
    %136 = vxpose.xlu0.b32.cont [3/16] 0.0, 128
    %137 = vxpose.xlu0.b32.cont [4/16] 0.0, 128
    %138 = vxpose.xlu0.b32.cont [5/16] 0.0, 128
    %139 = vxpose.xlu0.b32.cont [6/16] 0.0, 128
    %140 = vxpose.xlu0.b32.cont [7/16] 0.0, 128
    %141 = vxpose.xlu0.b32.cont [8/16] 0.0, 128
    %142 = vxpose.xlu0.b32.cont [9/16] 0.0, 128
    %143 = vxpose.xlu0.b32.cont [10/16] 0.0, 128
    %144 = vxpose.xlu0.b32.cont [11/16] 0.0, 128
    %145 = vxpose.xlu0.b32.cont [12/16] 0.0, 128
    %146 = vxpose.xlu0.b32.cont [13/16] 0.0, 128
    %147 = vxpose.xlu0.b32.cont [14/16] 0.0, 128
    %148 = vxpose.xlu0.b32.cont [15/16] 0.0, 128
    %149 = vxpose.xlu0.b32.end [16/16] 0.0, 128
    %v150 = vpop.trf.xlu0
    %v151 = vpop.trf.xlu0
    %v152 = vpop.trf.xlu0
    %v153 = vpop.trf.xlu0
    %v154 = vpop.trf.xlu0
    %v155 = vpop.trf.xlu0
    %v156 = vpop.trf.xlu0
    %v157 = vpop.trf.xlu0
    %v158 = vpop.trf.xlu0
    %v159 = vpop.trf.xlu0
    %v160 = vpop.trf.xlu0
    %v161 = vpop.trf.xlu0
    %v162 = vpop.trf.xlu0
    %v163 = vpop.trf.xlu0
    %v164 = vpop.trf.xlu0
    %v165 = vpop.trf.xlu0
    %v166 = vlaneseq
    %v167 = vshrl.u32 %v166, 7
    %v168 = vsub.s32 0, %v167
    %v169 = vrot.slane %v150, %v168
    %v170 = vsub.f32 %v132, %v169
    %v171 = vsub.f32 %v133, %v169
    %v172 = vmul.f32 %v170, 1.442695
    %v173 = vpow.pop %v172
    %v174 = vmul.f32 %v171, 1.442695
    %v175 = vpow.pop %v174
    %vm176 = vcmask 130048
    %v177 = vsel %vm176, %v173, 0.0
    %178 = vadd.xlane.f32.xlu0 %v177
    %v179 = vpop.xlane.xlu0 %178
    %v180 = vsel %vm176, %v175, 0.0
    %181 = vadd.xlane.f32.xlu0 %v180
    %v182 = vpop.xlane.xlu0 %181
    %v183 = vrsqrt.pop %v179
    %v184 = vrsqrt.pop %v182
    %185 = vxpose.xlu0.b32.start [1/16] %v183, 128
    %186 = vxpose.xlu0.b32.cont [2/16] %v184, 128
    %187 = vxpose.xlu0.b32.cont [3/16] 0.0, 128
    %188 = vxpose.xlu0.b32.cont [4/16] 0.0, 128
    %189 = vxpose.xlu0.b32.cont [5/16] 0.0, 128
    %190 = vxpose.xlu0.b32.cont [6/16] 0.0, 128
    %191 = vxpose.xlu0.b32.cont [7/16] 0.0, 128
    %192 = vxpose.xlu0.b32.cont [8/16] 0.0, 128
    %193 = vxpose.xlu0.b32.cont [9/16] 0.0, 128
    %194 = vxpose.xlu0.b32.cont [10/16] 0.0, 128
    %195 = vxpose.xlu0.b32.cont [11/16] 0.0, 128
    %196 = vxpose.xlu0.b32.cont [12/16] 0.0, 128
    %197 = vxpose.xlu0.b32.cont [13/16] 0.0, 128
    %198 = vxpose.xlu0.b32.cont [14/16] 0.0, 128
    %199 = vxpose.xlu0.b32.cont [15/16] 0.0, 128
    %200 = vxpose.xlu0.b32.end [16/16] 0.0, 128
    %v201 = vpop.trf.xlu0
    %v202 = vpop.trf.xlu0
    %v203 = vpop.trf.xlu0
    %v204 = vpop.trf.xlu0
    %v205 = vpop.trf.xlu0
    %v206 = vpop.trf.xlu0
    %v207 = vpop.trf.xlu0
    %v208 = vpop.trf.xlu0
    %v209 = vpop.trf.xlu0
    %v210 = vpop.trf.xlu0
    %v211 = vpop.trf.xlu0
    %v212 = vpop.trf.xlu0
    %v213 = vpop.trf.xlu0
    %v214 = vpop.trf.xlu0
    %v215 = vpop.trf.xlu0
    %v216 = vpop.trf.xlu0
    %v217 = vmul.f32 %v183, %v173
    %v218 = vmul.f32 %v184, %v175
    %v219 = vlaneseq
    %v220 = vshrl.u32 %v219, 7
    %v221 = vsub.s32 0, %v220
    %v222 = vrot.slane %v201, %v221
    %v223 = vmul.f32 %v217, %v222
    %v224 = vmul.f32 %v218, %v222
    %v225 = vpack.c.bf16 %v224, %v223
    %v226 = vpack.c.bf16 %v39, %v38
    %v228 = vsel %vm176, %v225, 0
    %230 = vmatprep.subr.bf16.mxu0 0
    %231 = vmatpush1.bf16.msra.mxu0 %v226
    %232 = vmatprep.subr.bf16.mxu0 0
    %233 = vmatpush1.bf16.msra.mxu0 0
    %234 = vmatprep.subr.bf16.mxu0 0
    %235 = vmatpush1.bf16.msra.mxu0 0
    %236 = vmatprep.subr.bf16.mxu0 0
    %237 = vmatpush1.bf16.msra.mxu0 0
    %238 = vmatprep.subr.bf16.mxu0 0
    %239 = vmatpush1.bf16.msra.mxu0 0
    %240 = vmatprep.subr.bf16.mxu0 0
    %241 = vmatpush1.bf16.msra.mxu0 0
    %242 = vmatprep.subr.bf16.mxu0 0
    %243 = vmatpush1.bf16.msra.mxu0 0
    %244 = vmatprep.subr.bf16.mxu0 0
    %245 = vmatpush1.bf16.msra.mxu0 0
    %246 = vmatprep.subr.bf16.mxu0 0
    %247 = vmatpush1.bf16.msra.mxu0 0
    %248 = vmatprep.subr.bf16.mxu0 0
    %249 = vmatpush1.bf16.msra.mxu0 0
    %250 = vmatprep.subr.bf16.mxu0 0
    %251 = vmatpush1.bf16.msra.mxu0 0
    %252 = vmatprep.subr.bf16.mxu0 0
    %253 = vmatpush1.bf16.msra.mxu0 0
    %254 = vmatprep.subr.bf16.mxu0 0
    %255 = vmatpush1.bf16.msra.mxu0 0
    %256 = vmatprep.subr.bf16.mxu0 0
    %257 = vmatpush1.bf16.msra.mxu0 0
    %258 = vmatprep.subr.bf16.mxu0 0
    %259 = vmatpush1.bf16.msra.mxu0 0
    %260 = vmatprep.subr.bf16.mxu0 0
    %261 = vmatpush1.bf16.msra.mxu0 0
    %262 = vmatprep.mubr.bf16.mxu0 0
    %263 = vmatmul.mubr.bf16.gmra.mrb[0].mxu0 %v228
    %v264 = vpop.f32.mrb[0].mxu0
    %v265 = vadd.f32 0.0, %v264
    %v266 = vpop.f32.mrb[0].mxu0
    %v267 = vpop.f32.mrb[0].mxu0
    %v268 = vadd.f32 0.0, %v267
    %v269 = vpop.f32.mrb[0].mxu0
    %270 = vdwg.mxu0
    %v271 = vsub.f32 %v38, %v265
    %v272 = vsub.f32 %v39, %v268
    %v273 = vpack.c.bf16 %v272, %v271
    %274 = vmatprep.subr.bf16.mxu0 0
    %275 = vmatpush1.bf16.msra.mxu0 %v273
    %276 = vmatprep.subr.bf16.mxu0 0
    %277 = vmatpush1.bf16.msra.mxu0 0
    %278 = vmatprep.subr.bf16.mxu0 0
    %279 = vmatpush1.bf16.msra.mxu0 0
    %280 = vmatprep.subr.bf16.mxu0 0
    %281 = vmatpush1.bf16.msra.mxu0 0
    %282 = vmatprep.subr.bf16.mxu0 0
    %283 = vmatpush1.bf16.msra.mxu0 0
    %284 = vmatprep.subr.bf16.mxu0 0
    %285 = vmatpush1.bf16.msra.mxu0 0
    %286 = vmatprep.subr.bf16.mxu0 0
    %287 = vmatpush1.bf16.msra.mxu0 0
    %288 = vmatprep.subr.bf16.mxu0 0
    %289 = vmatpush1.bf16.msra.mxu0 0
    %290 = vmatprep.subr.bf16.mxu0 0
    %291 = vmatpush1.bf16.msra.mxu0 0
    %292 = vmatprep.subr.bf16.mxu0 0
    %293 = vmatpush1.bf16.msra.mxu0 0
    %294 = vmatprep.subr.bf16.mxu0 0
    %295 = vmatpush1.bf16.msra.mxu0 0
    %296 = vmatprep.subr.bf16.mxu0 0
    %297 = vmatpush1.bf16.msra.mxu0 0
    %298 = vmatprep.subr.bf16.mxu0 0
    %299 = vmatpush1.bf16.msra.mxu0 0
    %300 = vmatprep.subr.bf16.mxu0 0
    %301 = vmatpush1.bf16.msra.mxu0 0
    %302 = vmatprep.subr.bf16.mxu0 0
    %303 = vmatpush1.bf16.msra.mxu0 0
    %304 = vmatprep.subr.bf16.mxu0 0
    %305 = vmatpush1.bf16.msra.mxu0 0
    %306 = vmatprep.mubr.bf16.mxu0 0
    %307 = vmatmul.mubr.bf16.gmra.mrb[0].mxu0 %v228
    %v308 = vpop.f32.mrb[0].mxu0
    %v309 = vadd.f32 0.0, %v308
    %v310 = vpop.f32.mrb[0].mxu0
    %v311 = vpop.f32.mrb[0].mxu0
    %v312 = vadd.f32 0.0, %v311
    %v313 = vpop.f32.mrb[0].mxu0
    %314 = vdwg.mxu0
    %v315 = vsub.f32 %v271, %v309
    %v316 = vsub.f32 %v272, %v312
    %v317 = vmul.f32 %v315, 2.0
    %v318 = vmul.f32 %v316, 2.0
    %v319 = vsub.f32 %v317, %v38
    %v320 = vsub.f32 %v318, %v39
    %v321 = vpack.c.bf16 %v320, %v319
    %322 = vmatprep.subr.bf16.mxu0 0
    %323 = vmatpush1.bf16.msra.mxu0 %v321
    %324 = vmatprep.subr.bf16.mxu0 0
    %325 = vmatpush1.bf16.msra.mxu0 0
    %326 = vmatprep.subr.bf16.mxu0 0
    %327 = vmatpush1.bf16.msra.mxu0 0
    %328 = vmatprep.subr.bf16.mxu0 0
    %329 = vmatpush1.bf16.msra.mxu0 0
    %330 = vmatprep.subr.bf16.mxu0 0
    %331 = vmatpush1.bf16.msra.mxu0 0
    %332 = vmatprep.subr.bf16.mxu0 0
    %333 = vmatpush1.bf16.msra.mxu0 0
    %334 = vmatprep.subr.bf16.mxu0 0
    %335 = vmatpush1.bf16.msra.mxu0 0
    %336 = vmatprep.subr.bf16.mxu0 0
    %337 = vmatpush1.bf16.msra.mxu0 0
    %338 = vmatprep.subr.bf16.mxu0 0
    %339 = vmatpush1.bf16.msra.mxu0 0
    %340 = vmatprep.subr.bf16.mxu0 0
    %341 = vmatpush1.bf16.msra.mxu0 0
    %342 = vmatprep.subr.bf16.mxu0 0
    %343 = vmatpush1.bf16.msra.mxu0 0
    %344 = vmatprep.subr.bf16.mxu0 0
    %345 = vmatpush1.bf16.msra.mxu0 0
    %346 = vmatprep.subr.bf16.mxu0 0
    %347 = vmatpush1.bf16.msra.mxu0 0
    %348 = vmatprep.subr.bf16.mxu0 0
    %349 = vmatpush1.bf16.msra.mxu0 0
    %350 = vmatprep.subr.bf16.mxu0 0
    %351 = vmatpush1.bf16.msra.mxu0 0
    %352 = vmatprep.subr.bf16.mxu0 0
    %353 = vmatpush1.bf16.msra.mxu0 0
    %354 = vmatprep.mubr.bf16.mxu0 0
    %355 = vmatmul.mubr.bf16.gmra.mrb[0].mxu0 %v228
    %v356 = vpop.f32.mrb[0].mxu0
    %v357 = vadd.f32 0.0, %v356
    %v358 = vpop.f32.mrb[0].mxu0
    %v359 = vpop.f32.mrb[0].mxu0
    %v360 = vadd.f32 0.0, %v359
    %v361 = vpop.f32.mrb[0].mxu0
    %362 = vdwg.mxu0
    %v363 = vsub.f32 %v319, %v357
    %v364 = vsub.f32 %v320, %v360
    %v365 = vmul.f32 %v363, 2.0
    %v366 = vmul.f32 %v364, 2.0
    %v367 = vsub.f32 %v365, %v271
    %v368 = vsub.f32 %v366, %v272
    %v369 = vpack.c.bf16 %v368, %v367
    %370 = vmatprep.subr.bf16.mxu0 0
    %371 = vmatpush1.bf16.msra.mxu0 %v369
    %372 = vmatprep.subr.bf16.mxu0 0
    %373 = vmatpush1.bf16.msra.mxu0 0
    %374 = vmatprep.subr.bf16.mxu0 0
    %375 = vmatpush1.bf16.msra.mxu0 0
    %376 = vmatprep.subr.bf16.mxu0 0
    %377 = vmatpush1.bf16.msra.mxu0 0
    %378 = vmatprep.subr.bf16.mxu0 0
    %379 = vmatpush1.bf16.msra.mxu0 0
    %380 = vmatprep.subr.bf16.mxu0 0
    %381 = vmatpush1.bf16.msra.mxu0 0
    %382 = vmatprep.subr.bf16.mxu0 0
    %383 = vmatpush1.bf16.msra.mxu0 0
    %384 = vmatprep.subr.bf16.mxu0 0
    %385 = vmatpush1.bf16.msra.mxu0 0
    %386 = vmatprep.subr.bf16.mxu0 0
    %387 = vmatpush1.bf16.msra.mxu0 0
    %388 = vmatprep.subr.bf16.mxu0 0
    %389 = vmatpush1.bf16.msra.mxu0 0
    %390 = vmatprep.subr.bf16.mxu0 0
    %391 = vmatpush1.bf16.msra.mxu0 0
    %392 = vmatprep.subr.bf16.mxu0 0
    %393 = vmatpush1.bf16.msra.mxu0 0
    %394 = vmatprep.subr.bf16.mxu0 0
    %395 = vmatpush1.bf16.msra.mxu0 0
    %396 = vmatprep.subr.bf16.mxu0 0
    %397 = vmatpush1.bf16.msra.mxu0 0
    %398 = vmatprep.subr.bf16.mxu0 0
    %399 = vmatpush1.bf16.msra.mxu0 0
    %400 = vmatprep.subr.bf16.mxu0 0
    %401 = vmatpush1.bf16.msra.mxu0 0
    %402 = vmatprep.mubr.bf16.mxu0 0
    %403 = vmatmul.mubr.bf16.gmra.mrb[0].mxu0 %v228
    %v404 = vpop.f32.mrb[0].mxu0
    %v405 = vadd.f32 0.0, %v404
    %v406 = vpop.f32.mrb[0].mxu0
    %v407 = vpop.f32.mrb[0].mxu0
    %v408 = vadd.f32 0.0, %v407
    %v409 = vpop.f32.mrb[0].mxu0
    %410 = vdwg.mxu0
    %v411 = vsub.f32 %v367, %v405
    %v412 = vsub.f32 %v368, %v408
    %v413 = vmul.f32 %v411, 2.0
    %v414 = vmul.f32 %v412, 2.0
    %v415 = vsub.f32 %v413, %v319
    %v416 = vsub.f32 %v414, %v320
    %v417 = vpack.c.bf16 %v416, %v415
    %418 = vmatprep.subr.bf16.mxu0 0
    %419 = vmatpush1.bf16.msra.mxu0 %v417
    %420 = vmatprep.subr.bf16.mxu0 0
    %421 = vmatpush1.bf16.msra.mxu0 0
    %422 = vmatprep.subr.bf16.mxu0 0
    %423 = vmatpush1.bf16.msra.mxu0 0
    %424 = vmatprep.subr.bf16.mxu0 0
    %425 = vmatpush1.bf16.msra.mxu0 0
    %426 = vmatprep.subr.bf16.mxu0 0
    %427 = vmatpush1.bf16.msra.mxu0 0
    %428 = vmatprep.subr.bf16.mxu0 0
    %429 = vmatpush1.bf16.msra.mxu0 0
    %430 = vmatprep.subr.bf16.mxu0 0
    %431 = vmatpush1.bf16.msra.mxu0 0
    %432 = vmatprep.subr.bf16.mxu0 0
    %433 = vmatpush1.bf16.msra.mxu0 0
    %434 = vmatprep.subr.bf16.mxu0 0
    %435 = vmatpush1.bf16.msra.mxu0 0
    %436 = vmatprep.subr.bf16.mxu0 0
    %437 = vmatpush1.bf16.msra.mxu0 0
    %438 = vmatprep.subr.bf16.mxu0 0
    %439 = vmatpush1.bf16.msra.mxu0 0
    %440 = vmatprep.subr.bf16.mxu0 0
    %441 = vmatpush1.bf16.msra.mxu0 0
    %442 = vmatprep.subr.bf16.mxu0 0
    %443 = vmatpush1.bf16.msra.mxu0 0
    %444 = vmatprep.subr.bf16.mxu0 0
    %445 = vmatpush1.bf16.msra.mxu0 0
    %446 = vmatprep.subr.bf16.mxu0 0
    %447 = vmatpush1.bf16.msra.mxu0 0
    %448 = vmatprep.subr.bf16.mxu0 0
    %449 = vmatpush1.bf16.msra.mxu0 0
    %450 = vmatprep.mubr.bf16.mxu0 0
    %451 = vmatmul.mubr.bf16.gmra.mrb[0].mxu0 %v228
    %v452 = vpop.f32.mrb[0].mxu0
    %v453 = vadd.f32 0.0, %v452
    %v454 = vpop.f32.mrb[0].mxu0
    %v455 = vpop.f32.mrb[0].mxu0
    %v456 = vadd.f32 0.0, %v455
    %v457 = vpop.f32.mrb[0].mxu0
    %458 = vdwg.mxu0
    %v459 = vsub.f32 %v415, %v453
    %v460 = vsub.f32 %v416, %v456
    %v461 = vmul.f32 %v459, 2.0
    %v462 = vmul.f32 %v460, 2.0
    %v463 = vsub.f32 %v461, %v367
    %v464 = vsub.f32 %v462, %v368
    %467 = vrot.lane.b32.xlu0 %v271, 6
    %v468 = vpop.permute.xlu0 %467
    %469 = vrot.lane.b32.xlu0 %v272, 6
    %v470 = vpop.permute.xlu0 %469
    %475 = vrot.lane.b32.xlu0 %v319, 12
    %v476 = vpop.permute.xlu0 %475
    %477 = vrot.lane.b32.xlu0 %v320, 12
    %v478 = vpop.permute.xlu0 %477
    %483 = vrot.lane.b32.xlu0 %v367, 18
    %v484 = vpop.permute.xlu0 %483
    %485 = vrot.lane.b32.xlu0 %v368, 18
    %v486 = vpop.permute.xlu0 %485
    %491 = vrot.lane.b32.xlu0 %v415, 24
    %v492 = vpop.permute.xlu0 %491
    %493 = vrot.lane.b32.xlu0 %v416, 24
    %v494 = vpop.permute.xlu0 %493
    %499 = vrot.lane.b32.xlu0 %v463, 30
    %v500 = vpop.permute.xlu0 %499
    %501 = vrot.lane.b32.xlu0 %v464, 30
    %v502 = vpop.permute.xlu0 %501
    %v505 = vsel %vm42, %v38, %v468
    %v506 = vsel %vm42, %v39, %v470
    %vm507 = vcmask 97280
    %v508 = vsel %vm507, %v505, %v476
    %v509 = vsel %vm507, %v506, %v478
    %vm510 = vcmask 146432
    %v511 = vsel %vm510, %v508, %v484
    %v512 = vsel %vm510, %v509, %v486
    %vm513 = vcmask 195584
    %v514 = vsel %vm513, %v511, %v492
    %v515 = vsel %vm513, %v512, %v494
    %vm516 = vcmask 244736
    %v517 = vsel %vm516, %v514, %v500
    %v518 = vsel %vm516, %v515, %v502
    %v519 = vld [vmem:[%s1] sm:$0xff]
    %v520 = vld [vmem:[%s1 + $0x8] sm:$0xff]
    %v521 = vld [vmem:[%s1 + $0x10] sm:$0xff]
    %v522 = vld [vmem:[%s1 + $0x18] sm:$0xff]
    %v523 = vld [vmem:[%s1 + $0x20] sm:$0xf]
    %v524 = vld [vmem:[%s2] sm:$0x1]
    %v526 = vlaneseq
    %v527 = vshrl.u32 %v526, 7
    %v528 = vsub.s32 0, %v527
    %v529 = vrot.slane %v524, %v528
    %vm531 = vcmask 293888
    %v533 = vsel %vm531, %v517, 0
    %v536 = vsel %vm531, %v518, 0
    %vm538 = vcmask 1043456
    %v540 = vsel %vm538, %v523, 0
    %542 = vmatprep.subr.mxu0 0.0
    %543 = vmatpush1.msra.mxu0 %v519
    %544 = vmatprep.subr.mxu0 0.0
    %545 = vmatpush1.msra.mxu0 %v520
    %546 = vmatprep.subr.mxu0 0.0
    %547 = vmatpush1.msra.mxu0 %v521
    %548 = vmatprep.subr.mxu0 0.0
    %549 = vmatpush1.msra.mxu0 %v522
    %550 = vmatprep.subr.mxu0 0.0
    %551 = vmatpush1.msra.mxu0 %v540
    %552 = vmatprep.subr.mxu0 0.0
    %553 = vmatpush1.msra.mxu0 0.0
    %554 = vmatprep.subr.mxu0 0.0
    %555 = vmatpush1.msra.mxu0 0.0
    %556 = vmatprep.subr.mxu0 0.0
    %557 = vmatpush1.msra.mxu0 0.0
    %558 = vmatprep.subr.mxu0 0.0
    %559 = vmatpush1.msra.mxu0 0.0
    %560 = vmatprep.subr.mxu0 0.0
    %561 = vmatpush1.msra.mxu0 0.0
    %562 = vmatprep.subr.mxu0 0.0
    %563 = vmatpush1.msra.mxu0 0.0
    %564 = vmatprep.subr.mxu0 0.0
    %565 = vmatpush1.msra.mxu0 0.0
    %566 = vmatprep.subr.mxu0 0.0
    %567 = vmatpush1.msra.mxu0 0.0
    %568 = vmatprep.subr.mxu0 0.0
    %569 = vmatpush1.msra.mxu0 0.0
    %570 = vmatprep.subr.mxu0 0.0
    %571 = vmatpush1.msra.mxu0 0.0
    %572 = vmatprep.subr.mxu0 0.0
    %573 = vmatpush1.msra.mxu0 0.0
    %574 = vmatprep.subr.mxu0 0.0
    %575 = vmatpush1.msra.mxu0 0.0
    %576 = vmatprep.subr.mxu0 0.0
    %577 = vmatpush1.msra.mxu0 0.0
    %578 = vmatprep.subr.mxu0 0.0
    %579 = vmatpush1.msra.mxu0 0.0
    %580 = vmatprep.subr.mxu0 0.0
    %581 = vmatpush1.msra.mxu0 0.0
    %582 = vmatprep.subr.mxu0 0.0
    %583 = vmatpush1.msra.mxu0 0.0
    %584 = vmatprep.subr.mxu0 0.0
    %585 = vmatpush1.msra.mxu0 0.0
    %586 = vmatprep.subr.mxu0 0.0
    %587 = vmatpush1.msra.mxu0 0.0
    %588 = vmatprep.subr.mxu0 0.0
    %589 = vmatpush1.msra.mxu0 0.0
    %590 = vmatprep.subr.mxu0 0.0
    %591 = vmatpush1.msra.mxu0 0.0
    %592 = vmatprep.subr.mxu0 0.0
    %593 = vmatpush1.msra.mxu0 0.0
    %594 = vmatprep.subr.mxu0 0.0
    %595 = vmatpush1.msra.mxu0 0.0
    %596 = vmatprep.subr.mxu0 0.0
    %597 = vmatpush1.msra.mxu0 0.0
    %598 = vmatprep.subr.mxu0 0.0
    %599 = vmatpush1.msra.mxu0 0.0
    %600 = vmatprep.subr.mxu0 0.0
    %601 = vmatpush1.msra.mxu0 0.0
    %602 = vmatprep.subr.mxu0 0.0
    %603 = vmatpush1.msra.mxu0 0.0
    %604 = vmatprep.subr.mxu0 0.0
    %605 = vmatpush1.msra.mxu0 0.0
    %606 = vmatprep.mubr.f32.mxu0 0.0
    %607 = vmatmul.mubr.f32.gmra.mrb[0].mxu0 %v533
    %v608 = vpop.f32.mrb[0].mxu0
    %v609 = vadd.f32 %v529, %v608
    %v610 = vpop.f32.mrb[0].mxu0
    %611 = vmatprep.mubr.f32.mxu0 0.0
    %612 = vmatmul.mubr.f32.gmra.mrb[0].mxu0 %v536
    %v613 = vpop.f32.mrb[0].mxu0
    %v614 = vadd.f32 %v529, %v613
    %v615 = vpop.f32.mrb[0].mxu0
    %616 = vdwg.mxu0
    %v617 = vmax.f32 %v609, 0.0
    %v618 = vmax.f32 %v614, 0.0
    %v619 = vpack.c.bf16 %v618, %v617
    %620 = vmatprep.subr.bf16.mxu0 0
    %621 = vmatpush1.bf16.msra.mxu0 %v619
    %622 = vmatprep.subr.bf16.mxu0 0
    %623 = vmatpush1.bf16.msra.mxu0 0
    %624 = vmatprep.subr.bf16.mxu0 0
    %625 = vmatpush1.bf16.msra.mxu0 0
    %626 = vmatprep.subr.bf16.mxu0 0
    %627 = vmatpush1.bf16.msra.mxu0 0
    %628 = vmatprep.subr.bf16.mxu0 0
    %629 = vmatpush1.bf16.msra.mxu0 0
    %630 = vmatprep.subr.bf16.mxu0 0
    %631 = vmatpush1.bf16.msra.mxu0 0
    %632 = vmatprep.subr.bf16.mxu0 0
    %633 = vmatpush1.bf16.msra.mxu0 0
    %634 = vmatprep.subr.bf16.mxu0 0
    %635 = vmatpush1.bf16.msra.mxu0 0
    %636 = vmatprep.subr.bf16.mxu0 0
    %637 = vmatpush1.bf16.msra.mxu0 0
    %638 = vmatprep.subr.bf16.mxu0 0
    %639 = vmatpush1.bf16.msra.mxu0 0
    %640 = vmatprep.subr.bf16.mxu0 0
    %641 = vmatpush1.bf16.msra.mxu0 0
    %642 = vmatprep.subr.bf16.mxu0 0
    %643 = vmatpush1.bf16.msra.mxu0 0
    %644 = vmatprep.subr.bf16.mxu0 0
    %645 = vmatpush1.bf16.msra.mxu0 0
    %646 = vmatprep.subr.bf16.mxu0 0
    %647 = vmatpush1.bf16.msra.mxu0 0
    %648 = vmatprep.subr.bf16.mxu0 0
    %649 = vmatpush1.bf16.msra.mxu0 0
    %650 = vmatprep.subr.bf16.mxu0 0
    %651 = vmatpush1.bf16.msra.mxu0 0
    %652 = vmatprep.mubr.bf16.mxu0 0
    %653 = vmatmul.mubr.bf16.gmra.mrb[0].mxu0 %v228
    %v654 = vpop.f32.mrb[0].mxu0
    %v655 = vadd.f32 0.0, %v654
    %v656 = vpop.f32.mrb[0].mxu0
    %v657 = vpop.f32.mrb[0].mxu0
    %v658 = vadd.f32 0.0, %v657
    %v659 = vpop.f32.mrb[0].mxu0
    %660 = vdwg.mxu0
    %v661 = vsub.f32 %v617, %v655
    %v662 = vsub.f32 %v618, %v658
    %v663 = vpack.c.bf16 %v662, %v661
    %664 = vxpose.xlu0.c.b16.start [1/8] %v619, 128
    %665 = vxpose.xlu0.c.b16.cont [2/8] 0, 128
    %666 = vxpose.xlu0.c.b16.cont [3/8] 0, 128
    %667 = vxpose.xlu0.c.b16.cont [4/8] 0, 128
    %668 = vxpose.xlu0.c.b16.cont [5/8] 0, 128
    %669 = vxpose.xlu0.c.b16.cont [6/8] 0, 128
    %670 = vxpose.xlu0.c.b16.cont [7/8] 0, 128
    %671 = vxpose.xlu0.c.b16.end [8/8] 0, 128
    %v672 = vpop.trf.xlu0
    %v673 = vpop.trf.xlu0
    %v674 = vpop.trf.xlu0
    %v675 = vpop.trf.xlu0
    %v676 = vpop.trf.xlu0
    %v677 = vpop.trf.xlu0
    %v678 = vpop.trf.xlu0
    %v679 = vpop.trf.xlu0
    %v681 = vsel %vm176, %v672, 0
    %v684 = vsel %vm176, %v673, 0
    %v687 = vsel %vm176, %v674, 0
    %v690 = vsel %vm176, %v675, 0
    %v693 = vsel %vm176, %v676, 0
    %v696 = vsel %vm176, %v677, 0
    %v699 = vsel %vm176, %v678, 0
    %v702 = vsel %vm176, %v679, 0
    %704 = vmatprep.subr.bf16.mxu0 0
    %705 = vmatpush1.bf16.msra.mxu0 %v663
    %706 = vmatprep.subr.bf16.mxu0 0
    %707 = vmatpush1.bf16.msra.mxu0 0
    %708 = vmatprep.subr.bf16.mxu0 0
    %709 = vmatpush1.bf16.msra.mxu0 0
    %710 = vmatprep.subr.bf16.mxu0 0
    %711 = vmatpush1.bf16.msra.mxu0 0
    %712 = vmatprep.subr.bf16.mxu0 0
    %713 = vmatpush1.bf16.msra.mxu0 0
    %714 = vmatprep.subr.bf16.mxu0 0
    %715 = vmatpush1.bf16.msra.mxu0 0
    %716 = vmatprep.subr.bf16.mxu0 0
    %717 = vmatpush1.bf16.msra.mxu0 0
    %718 = vmatprep.subr.bf16.mxu0 0
    %719 = vmatpush1.bf16.msra.mxu0 0
    %720 = vmatprep.subr.bf16.mxu0 0
    %721 = vmatpush1.bf16.msra.mxu0 0
    %722 = vmatprep.subr.bf16.mxu0 0
    %723 = vmatpush1.bf16.msra.mxu0 0
    %724 = vmatprep.subr.bf16.mxu0 0
    %725 = vmatpush1.bf16.msra.mxu0 0
    %726 = vmatprep.subr.bf16.mxu0 0
    %727 = vmatpush1.bf16.msra.mxu0 0
    %728 = vmatprep.subr.bf16.mxu0 0
    %729 = vmatpush1.bf16.msra.mxu0 0
    %730 = vmatprep.subr.bf16.mxu0 0
    %731 = vmatpush1.bf16.msra.mxu0 0
    %732 = vmatprep.subr.bf16.mxu0 0
    %733 = vmatpush1.bf16.msra.mxu0 0
    %734 = vmatprep.subr.bf16.mxu0 0
    %735 = vmatpush1.bf16.msra.mxu0 0
    %736 = vmatprep.mubr.bf16.mxu0 0
    %737 = vmatmul.mubr.bf16.gmra.mrb[0].mxu0 %v681
    %v738 = vpop.f32.mrb[0].mxu0
    %v739 = vadd.f32 0.0, %v738
    %v740 = vpop.f32.mrb[0].mxu0
    %v741 = vpop.f32.mrb[0].mxu0
    %v742 = vadd.f32 0.0, %v741
    %v743 = vpop.f32.mrb[0].mxu0
    %744 = vmatprep.mubr.bf16.mxu0 0
    %745 = vmatmul.mubr.bf16.gmra.mrb[0].mxu0 %v684
    %v746 = vpop.f32.mrb[0].mxu0
    %v747 = vadd.f32 0.0, %v746
    %v748 = vpop.f32.mrb[0].mxu0
    %v749 = vpop.f32.mrb[0].mxu0
    %v750 = vadd.f32 0.0, %v749
    %v751 = vpop.f32.mrb[0].mxu0
    %752 = vmatprep.mubr.bf16.mxu0 0
    %753 = vmatmul.mubr.bf16.gmra.mrb[0].mxu0 %v687
    %v754 = vpop.f32.mrb[0].mxu0
    %v755 = vadd.f32 0.0, %v754
    %v756 = vpop.f32.mrb[0].mxu0
    %v757 = vpop.f32.mrb[0].mxu0
    %v758 = vadd.f32 0.0, %v757
    %v759 = vpop.f32.mrb[0].mxu0
    %760 = vmatprep.mubr.bf16.mxu0 0
    %761 = vmatmul.mubr.bf16.gmra.mrb[0].mxu0 %v690
    %v762 = vpop.f32.mrb[0].mxu0
    %v763 = vadd.f32 0.0, %v762
    %v764 = vpop.f32.mrb[0].mxu0
    %v765 = vpop.f32.mrb[0].mxu0
    %v766 = vadd.f32 0.0, %v765
    %v767 = vpop.f32.mrb[0].mxu0
    %768 = vmatprep.mubr.bf16.mxu0 0
    %769 = vmatmul.mubr.bf16.gmra.mrb[0].mxu0 %v693
    %v770 = vpop.f32.mrb[0].mxu0
    %v771 = vadd.f32 0.0, %v770
    %v772 = vpop.f32.mrb[0].mxu0
    %v773 = vpop.f32.mrb[0].mxu0
    %v774 = vadd.f32 0.0, %v773
    %v775 = vpop.f32.mrb[0].mxu0
    %776 = vmatprep.mubr.bf16.mxu0 0
    %777 = vmatmul.mubr.bf16.gmra.mrb[0].mxu0 %v696
    %v778 = vpop.f32.mrb[0].mxu0
    %v779 = vadd.f32 0.0, %v778
    %v780 = vpop.f32.mrb[0].mxu0
    %v781 = vpop.f32.mrb[0].mxu0
    %v782 = vadd.f32 0.0, %v781
    %v783 = vpop.f32.mrb[0].mxu0
    %784 = vmatprep.mubr.bf16.mxu0 0
    %785 = vmatmul.mubr.bf16.gmra.mrb[0].mxu0 %v699
    %v786 = vpop.f32.mrb[0].mxu0
    %v787 = vadd.f32 0.0, %v786
    %v788 = vpop.f32.mrb[0].mxu0
    %v789 = vpop.f32.mrb[0].mxu0
    %v790 = vadd.f32 0.0, %v789
    %v791 = vpop.f32.mrb[0].mxu0
    %792 = vmatprep.mubr.bf16.mxu0 0
    %793 = vmatmul.mubr.bf16.gmra.mrb[0].mxu0 %v702
    %v794 = vpop.f32.mrb[0].mxu0
    %v795 = vadd.f32 0.0, %v794
    %v796 = vpop.f32.mrb[0].mxu0
    %v797 = vpop.f32.mrb[0].mxu0
    %v798 = vadd.f32 0.0, %v797
    %v799 = vpop.f32.mrb[0].mxu0
    %800 = vdwg.mxu0
    %v801 = vmul.f32 %v739, %v739
    %v802 = vmul.f32 %v742, %v742
    %v803 = vmul.f32 %v747, %v747
    %v804 = vmul.f32 %v750, %v750
    %v805 = vmul.f32 %v755, %v755
    %v806 = vmul.f32 %v758, %v758
    %v807 = vmul.f32 %v763, %v763
    %v808 = vmul.f32 %v766, %v766
    %v809 = vmul.f32 %v771, %v771
    %v810 = vmul.f32 %v774, %v774
    %v811 = vmul.f32 %v779, %v779
    %v812 = vmul.f32 %v782, %v782
    %v813 = vmul.f32 %v787, %v787
    %v814 = vmul.f32 %v790, %v790
    %v815 = vmul.f32 %v795, %v795
    %v816 = vmul.f32 %v798, %v798
    %v817 = vadd.f32 %v801, %v802
    %v818 = vadd.f32 %v817, %v803
    %v819 = vadd.f32 %v818, %v804
    %v820 = vadd.f32 %v819, %v805
    %v821 = vadd.f32 %v820, %v806
    %v822 = vadd.f32 %v821, %v807
    %v823 = vadd.f32 %v822, %v808
    %v824 = vadd.f32 %v823, %v809
    %v825 = vadd.f32 %v824, %v810
    %v826 = vadd.f32 %v825, %v811
    %v827 = vadd.f32 %v826, %v812
    %v828 = vadd.f32 %v827, %v813
    %v829 = vadd.f32 %v828, %v814
    %v830 = vadd.f32 %v829, %v815
    %v831 = vadd.f32 %v830, %v816
    %832 = vadd.xlane.f32.xlu0 %v831
    %v833 = vpop.xlane.xlu0 %832
    %v834 = vrot.slane %v833, 4
    %v835 = vadd.f32 %v833, %v834
    %v836 = vrot.slane %v835, 2
    %v837 = vadd.f32 %v835, %v836
    %v838 = vrot.slane %v837, 1
    %v839 = vadd.f32 %v837, %v838
    %s840 = vtos %v839
    %v841 = vstv %s840
    %v842 = vmax.f32 %v617, %v618
    %v843 = vrot.slane %v842, 4
    %v844 = vmax.f32 %v842, %v843
    %v845 = vrot.slane %v844, 2
    %v846 = vmax.f32 %v844, %v845
    %v847 = vrot.slane %v846, 1
    %v848 = vmax.f32 %v846, %v847
    %v849 = vld [vmem:[#allocation2] sm:$0xff]
    %v850 = vld [vmem:[#allocation2 + $0x8] sm:$0xff]
    %v851 = vld [vmem:[#allocation2 + $0x10] sm:$0xff]
    %v852 = vld [vmem:[#allocation2 + $0x18] sm:$0xff]
    %v853 = vld [vmem:[#allocation2 + $0x20] sm:$0xff]
    %v854 = vld [vmem:[#allocation2 + $0x28] sm:$0xff]
    %v855 = vld [vmem:[#allocation2 + $0x30] sm:$0xff]
    %v856 = vld [vmem:[#allocation2 + $0x38] sm:$0xff]
    %v857 = vld [vmem:[#allocation2 + $0x40] sm:$0xff]
    %v858 = vld [vmem:[#allocation2 + $0x48] sm:$0xff]
    %v859 = vld [vmem:[#allocation2 + $0x50] sm:$0xff]
    %v860 = vld [vmem:[#allocation2 + $0x58] sm:$0xff]
    %v861 = vld [vmem:[#allocation2 + $0x60] sm:$0xff]
    %v862 = vld [vmem:[#allocation2 + $0x68] sm:$0xff]
    %v863 = vld [vmem:[#allocation2 + $0x70] sm:$0xff]
    %v864 = vld [vmem:[#allocation2 + $0x78] sm:$0xff]
    %v865 = vld [vmem:[%s4] sm:$0x1]
    %866 = vmatprep.subr.mxu0 0.0
    %867 = vmatpush1.msra.mxu0 %v849
    %868 = vmatprep.subr.mxu0 0.0
    %869 = vmatpush1.msra.mxu0 %v850
    %870 = vmatprep.subr.mxu0 0.0
    %871 = vmatpush1.msra.mxu0 %v851
    %872 = vmatprep.subr.mxu0 0.0
    %873 = vmatpush1.msra.mxu0 %v852
    %874 = vmatprep.subr.mxu0 0.0
    %875 = vmatpush1.msra.mxu0 %v853
    %876 = vmatprep.subr.mxu0 0.0
    %877 = vmatpush1.msra.mxu0 %v854
    %878 = vmatprep.subr.mxu0 0.0
    %879 = vmatpush1.msra.mxu0 %v855
    %880 = vmatprep.subr.mxu0 0.0
    %881 = vmatpush1.msra.mxu0 %v856
    %882 = vmatprep.subr.mxu0 0.0
    %883 = vmatpush1.msra.mxu0 %v857
    %884 = vmatprep.subr.mxu0 0.0
    %885 = vmatpush1.msra.mxu0 %v858
    %886 = vmatprep.subr.mxu0 0.0
    %887 = vmatpush1.msra.mxu0 %v859
    %888 = vmatprep.subr.mxu0 0.0
    %889 = vmatpush1.msra.mxu0 %v860
    %890 = vmatprep.subr.mxu0 0.0
    %891 = vmatpush1.msra.mxu0 %v861
    %892 = vmatprep.subr.mxu0 0.0
    %893 = vmatpush1.msra.mxu0 %v862
    %894 = vmatprep.subr.mxu0 0.0
    %895 = vmatpush1.msra.mxu0 %v863
    %896 = vmatprep.subr.mxu0 0.0
    %897 = vmatpush1.msra.mxu0 %v864
    %898 = vmatprep.subr.mxu0 0.0
    %899 = vmatpush1.msra.mxu0 0.0
    %900 = vmatprep.subr.mxu0 0.0
    %901 = vmatpush1.msra.mxu0 0.0
    %902 = vmatprep.subr.mxu0 0.0
    %903 = vmatpush1.msra.mxu0 0.0
    %904 = vmatprep.subr.mxu0 0.0
    %905 = vmatpush1.msra.mxu0 0.0
    %906 = vmatprep.subr.mxu0 0.0
    %907 = vmatpush1.msra.mxu0 0.0
    %908 = vmatprep.subr.mxu0 0.0
    %909 = vmatpush1.msra.mxu0 0.0
    %910 = vmatprep.subr.mxu0 0.0
    %911 = vmatpush1.msra.mxu0 0.0
    %912 = vmatprep.subr.mxu0 0.0
    %913 = vmatpush1.msra.mxu0 0.0
    %914 = vmatprep.subr.mxu0 0.0
    %915 = vmatpush1.msra.mxu0 0.0
    %916 = vmatprep.subr.mxu0 0.0
    %917 = vmatpush1.msra.mxu0 0.0
    %918 = vmatprep.subr.mxu0 0.0
    %919 = vmatpush1.msra.mxu0 0.0
    %920 = vmatprep.subr.mxu0 0.0
    %921 = vmatpush1.msra.mxu0 0.0
    %922 = vmatprep.subr.mxu0 0.0
    %923 = vmatpush1.msra.mxu0 0.0
    %924 = vmatprep.subr.mxu0 0.0
    %925 = vmatpush1.msra.mxu0 0.0
    %926 = vmatprep.subr.mxu0 0.0
    %927 = vmatpush1.msra.mxu0 0.0
    %928 = vmatprep.subr.mxu0 0.0
    %929 = vmatpush1.msra.mxu0 0.0
    %930 = vmatprep.mubr.f32.mxu0 0.0
    %931 = vmatmul.mubr.f32.gmra.mrb[0].mxu0 %v848
    %v932 = vpop.f32.mrb[0].mxu0
    %v933 = vadd.f32 %v865, %v932
    %v934 = vpop.f32.mrb[0].mxu0
    %935 = vdwg.mxu0
    %s936 = scalar_lea.vmem %s0, 16
    %v937 = vld [vmem:[%s936] sm:$0xff]
    %v938 = vld [vmem:[%s936 + $0x8] sm:$0xff]
    %v939 = vmul.f32 %v937, %v937
    %v940 = vmul.f32 %v938, %v938
    %v941 = vsel %vm42, %v939, 0.0
    %942 = vadd.xlane.f32.xlu0 %v941
    %v943 = vpop.xlane.xlu0 %942
    %v944 = vsel %vm42, %v940, 0.0
    %945 = vadd.xlane.f32.xlu0 %v944
    %v946 = vpop.xlane.xlu0 %945
    %v948 = vsel %vm42, %v937, 0
    %v951 = vsel %vm42, %v938, 0
    %953 = vmatprep.subr.mxu0 0.0
    %954 = vmatpush1.xpose.msra.mxu0 %v948
    %955 = vmatprep.subr.mxu0 0.0
    %956 = vmatpush1.xpose.msra.mxu0 %v951
    %957 = vmatprep.subr.mxu0 0.0
    %958 = vmatpush1.xpose.msra.mxu0 0.0
    %959 = vmatprep.subr.mxu0 0.0
    %960 = vmatpush1.xpose.msra.mxu0 0.0
    %961 = vmatprep.subr.mxu0 0.0
    %962 = vmatpush1.xpose.msra.mxu0 0.0
    %963 = vmatprep.subr.mxu0 0.0
    %964 = vmatpush1.xpose.msra.mxu0 0.0
    %965 = vmatprep.subr.mxu0 0.0
    %966 = vmatpush1.xpose.msra.mxu0 0.0
    %967 = vmatprep.subr.mxu0 0.0
    %968 = vmatpush1.xpose.msra.mxu0 0.0
    %969 = vmatprep.subr.mxu0 0.0
    %970 = vmatpush1.xpose.msra.mxu0 0.0
    %971 = vmatprep.subr.mxu0 0.0
    %972 = vmatpush1.xpose.msra.mxu0 0.0
    %973 = vmatprep.subr.mxu0 0.0
    %974 = vmatpush1.xpose.msra.mxu0 0.0
    %975 = vmatprep.subr.mxu0 0.0
    %976 = vmatpush1.xpose.msra.mxu0 0.0
    %977 = vmatprep.subr.mxu0 0.0
    %978 = vmatpush1.xpose.msra.mxu0 0.0
    %979 = vmatprep.subr.mxu0 0.0
    %980 = vmatpush1.xpose.msra.mxu0 0.0
    %981 = vmatprep.subr.mxu0 0.0
    %982 = vmatpush1.xpose.msra.mxu0 0.0
    %983 = vmatprep.subr.mxu0 0.0
    %984 = vmatpush1.xpose.msra.mxu0 0.0
    %985 = vmatprep.subr.mxu0 0.0
    %986 = vmatpush1.xpose.msra.mxu0 0.0
    %987 = vmatprep.subr.mxu0 0.0
    %988 = vmatpush1.xpose.msra.mxu0 0.0
    %989 = vmatprep.subr.mxu0 0.0
    %990 = vmatpush1.xpose.msra.mxu0 0.0
    %991 = vmatprep.subr.mxu0 0.0
    %992 = vmatpush1.xpose.msra.mxu0 0.0
    %993 = vmatprep.subr.mxu0 0.0
    %994 = vmatpush1.xpose.msra.mxu0 0.0
    %995 = vmatprep.subr.mxu0 0.0
    %996 = vmatpush1.xpose.msra.mxu0 0.0
    %997 = vmatprep.subr.mxu0 0.0
    %998 = vmatpush1.xpose.msra.mxu0 0.0
    %999 = vmatprep.subr.mxu0 0.0
    %1000 = vmatpush1.xpose.msra.mxu0 0.0
    %1001 = vmatprep.subr.mxu0 0.0
    %1002 = vmatpush1.xpose.msra.mxu0 0.0
    %1003 = vmatprep.subr.mxu0 0.0
    %1004 = vmatpush1.xpose.msra.mxu0 0.0
    %1005 = vmatprep.subr.mxu0 0.0
    %1006 = vmatpush1.xpose.msra.mxu0 0.0
    %1007 = vmatprep.subr.mxu0 0.0
    %1008 = vmatpush1.xpose.msra.mxu0 0.0
    %1009 = vmatprep.subr.mxu0 0.0
    %1010 = vmatpush1.xpose.msra.mxu0 0.0
    %1011 = vmatprep.subr.mxu0 0.0
    %1012 = vmatpush1.xpose.msra.mxu0 0.0
    %1013 = vmatprep.subr.mxu0 0.0
    %1014 = vmatpush1.xpose.msra.mxu0 0.0
    %1015 = vmatprep.subr.mxu0 0.0
    %1016 = vmatpush1.xpose.msra.mxu0 0.0
    %1017 = vmatprep.mubr.f32.mxu0 0.0
    %1018 = vmatmul.mubr.f32.gmra.mrb[0].mxu0 %v948
    %v1019 = vpop.f32.mrb[0].mxu0
    %v1020 = vadd.f32 0.0, %v1019
    %v1021 = vpop.f32.mrb[0].mxu0
    %1022 = vmatprep.mubr.f32.mxu0 0.0
    %1023 = vmatmul.mubr.f32.gmra.mrb[0].mxu0 %v951
    %v1024 = vpop.f32.mrb[0].mxu0
    %v1025 = vadd.f32 0.0, %v1024
    %v1026 = vpop.f32.mrb[0].mxu0
    %1027 = vdwg.mxu0
    %v1028 = vmul.f32 %v1020, 2.0
    %v1029 = vmul.f32 %v1025, 2.0
    %v1030 = vsub.f32 %v1028, %v943
    %v1031 = vsub.f32 %v1029, %v946
    %1032 = vxpose.xlu0.b32.start [1/16] %v943, 128
    %1033 = vxpose.xlu0.b32.cont [2/16] %v946, 128
    %1034 = vxpose.xlu0.b32.cont [3/16] 0.0, 128
    %1035 = vxpose.xlu0.b32.cont [4/16] 0.0, 128
    %1036 = vxpose.xlu0.b32.cont [5/16] 0.0, 128
    %1037 = vxpose.xlu0.b32.cont [6/16] 0.0, 128
    %1038 = vxpose.xlu0.b32.cont [7/16] 0.0, 128
    %1039 = vxpose.xlu0.b32.cont [8/16] 0.0, 128
    %1040 = vxpose.xlu0.b32.cont [9/16] 0.0, 128
    %1041 = vxpose.xlu0.b32.cont [10/16] 0.0, 128
    %1042 = vxpose.xlu0.b32.cont [11/16] 0.0, 128
    %1043 = vxpose.xlu0.b32.cont [12/16] 0.0, 128
    %1044 = vxpose.xlu0.b32.cont [13/16] 0.0, 128
    %1045 = vxpose.xlu0.b32.cont [14/16] 0.0, 128
    %1046 = vxpose.xlu0.b32.cont [15/16] 0.0, 128
    %1047 = vxpose.xlu0.b32.end [16/16] 0.0, 128
    %v1048 = vpop.trf.xlu0
    %v1049 = vpop.trf.xlu0
    %v1050 = vpop.trf.xlu0
    %v1051 = vpop.trf.xlu0
    %v1052 = vpop.trf.xlu0
    %v1053 = vpop.trf.xlu0
    %v1054 = vpop.trf.xlu0
    %v1055 = vpop.trf.xlu0
    %v1056 = vpop.trf.xlu0
    %v1057 = vpop.trf.xlu0
    %v1058 = vpop.trf.xlu0
    %v1059 = vpop.trf.xlu0
    %v1060 = vpop.trf.xlu0
    %v1061 = vpop.trf.xlu0
    %v1062 = vpop.trf.xlu0
    %v1063 = vpop.trf.xlu0
    %v1064 = vlaneseq
    %v1065 = vshrl.u32 %v1064, 7
    %v1066 = vsub.s32 0, %v1065
    %v1067 = vrot.slane %v1048, %v1066
    %v1068 = vsub.f32 %v1030, %v1067
    %v1069 = vsub.f32 %v1031, %v1067
    %v1070 = vmul.f32 %v1068, 1.442695
    %v1071 = vpow.pop %v1070
    %v1072 = vmul.f32 %v1069, 1.442695
    %v1073 = vpow.pop %v1072
    %v1074 = vsel %vm176, %v1071, 0.0
    %1075 = vadd.xlane.f32.xlu0 %v1074
    %v1076 = vpop.xlane.xlu0 %1075
    %v1077 = vsel %vm176, %v1073, 0.0
    %1078 = vadd.xlane.f32.xlu0 %v1077
    %v1079 = vpop.xlane.xlu0 %1078
    %v1080 = vrsqrt.pop %v1076
    %v1081 = vrsqrt.pop %v1079
    %1082 = vxpose.xlu0.b32.start [1/16] %v1080, 128
    %1083 = vxpose.xlu0.b32.cont [2/16] %v1081, 128
    %1084 = vxpose.xlu0.b32.cont [3/16] 0.0, 128
    %1085 = vxpose.xlu0.b32.cont [4/16] 0.0, 128
    %1086 = vxpose.xlu0.b32.cont [5/16] 0.0, 128
    %1087 = vxpose.xlu0.b32.cont [6/16] 0.0, 128
    %1088 = vxpose.xlu0.b32.cont [7/16] 0.0, 128
    %1089 = vxpose.xlu0.b32.cont [8/16] 0.0, 128
    %1090 = vxpose.xlu0.b32.cont [9/16] 0.0, 128
    %1091 = vxpose.xlu0.b32.cont [10/16] 0.0, 128
    %1092 = vxpose.xlu0.b32.cont [11/16] 0.0, 128
    %1093 = vxpose.xlu0.b32.cont [12/16] 0.0, 128
    %1094 = vxpose.xlu0.b32.cont [13/16] 0.0, 128
    %1095 = vxpose.xlu0.b32.cont [14/16] 0.0, 128
    %1096 = vxpose.xlu0.b32.cont [15/16] 0.0, 128
    %1097 = vxpose.xlu0.b32.end [16/16] 0.0, 128
    %v1098 = vpop.trf.xlu0
    %v1099 = vpop.trf.xlu0
    %v1100 = vpop.trf.xlu0
    %v1101 = vpop.trf.xlu0
    %v1102 = vpop.trf.xlu0
    %v1103 = vpop.trf.xlu0
    %v1104 = vpop.trf.xlu0
    %v1105 = vpop.trf.xlu0
    %v1106 = vpop.trf.xlu0
    %v1107 = vpop.trf.xlu0
    %v1108 = vpop.trf.xlu0
    %v1109 = vpop.trf.xlu0
    %v1110 = vpop.trf.xlu0
    %v1111 = vpop.trf.xlu0
    %v1112 = vpop.trf.xlu0
    %v1113 = vpop.trf.xlu0
    %v1114 = vmul.f32 %v1080, %v1071
    %v1115 = vmul.f32 %v1081, %v1073
    %v1116 = vlaneseq
    %v1117 = vshrl.u32 %v1116, 7
    %v1118 = vsub.s32 0, %v1117
    %v1119 = vrot.slane %v1098, %v1118
    %v1120 = vmul.f32 %v1114, %v1119
    %v1121 = vmul.f32 %v1115, %v1119
    %v1122 = vpack.c.bf16 %v1121, %v1120
    %v1123 = vpack.c.bf16 %v938, %v937
    %v1125 = vsel %vm176, %v1122, 0
    %1127 = vmatprep.subr.bf16.mxu0 0
    %1128 = vmatpush1.bf16.msra.mxu0 %v1123
    %1129 = vmatprep.subr.bf16.mxu0 0
    %1130 = vmatpush1.bf16.msra.mxu0 0
    %1131 = vmatprep.subr.bf16.mxu0 0
    %1132 = vmatpush1.bf16.msra.mxu0 0
    %1133 = vmatprep.subr.bf16.mxu0 0
    %1134 = vmatpush1.bf16.msra.mxu0 0
    %1135 = vmatprep.subr.bf16.mxu0 0
    %1136 = vmatpush1.bf16.msra.mxu0 0
    %1137 = vmatprep.subr.bf16.mxu0 0
    %1138 = vmatpush1.bf16.msra.mxu0 0
    %1139 = vmatprep.subr.bf16.mxu0 0
    %1140 = vmatpush1.bf16.msra.mxu0 0
    %1141 = vmatprep.subr.bf16.mxu0 0
    %1142 = vmatpush1.bf16.msra.mxu0 0
    %1143 = vmatprep.subr.bf16.mxu0 0
    %1144 = vmatpush1.bf16.msra.mxu0 0
    %1145 = vmatprep.subr.bf16.mxu0 0
    %1146 = vmatpush1.bf16.msra.mxu0 0
    %1147 = vmatprep.subr.bf16.mxu0 0
    %1148 = vmatpush1.bf16.msra.mxu0 0
    %1149 = vmatprep.subr.bf16.mxu0 0
    %1150 = vmatpush1.bf16.msra.mxu0 0
    %1151 = vmatprep.subr.bf16.mxu0 0
    %1152 = vmatpush1.bf16.msra.mxu0 0
    %1153 = vmatprep.subr.bf16.mxu0 0
    %1154 = vmatpush1.bf16.msra.mxu0 0
    %1155 = vmatprep.subr.bf16.mxu0 0
    %1156 = vmatpush1.bf16.msra.mxu0 0
    %1157 = vmatprep.subr.bf16.mxu0 0
    %1158 = vmatpush1.bf16.msra.mxu0 0
    %1159 = vmatprep.mubr.bf16.mxu0 0
    %1160 = vmatmul.mubr.bf16.gmra.mrb[0].mxu0 %v1125
    %v1161 = vpop.f32.mrb[0].mxu0
    %v1162 = vadd.f32 0.0, %v1161
    %v1163 = vpop.f32.mrb[0].mxu0
    %v1164 = vpop.f32.mrb[0].mxu0
    %v1165 = vadd.f32 0.0, %v1164
    %v1166 = vpop.f32.mrb[0].mxu0
    %1167 = vdwg.mxu0
    %v1168 = vsub.f32 %v937, %v1162
    %v1169 = vsub.f32 %v938, %v1165
    %v1170 = vpack.c.bf16 %v1169, %v1168
    %1171 = vmatprep.subr.bf16.mxu0 0
    %1172 = vmatpush1.bf16.msra.mxu0 %v1170
    %1173 = vmatprep.subr.bf16.mxu0 0
    %1174 = vmatpush1.bf16.msra.mxu0 0
    %1175 = vmatprep.subr.bf16.mxu0 0
    %1176 = vmatpush1.bf16.msra.mxu0 0
    %1177 = vmatprep.subr.bf16.mxu0 0
    %1178 = vmatpush1.bf16.msra.mxu0 0
    %1179 = vmatprep.subr.bf16.mxu0 0
    %1180 = vmatpush1.bf16.msra.mxu0 0
    %1181 = vmatprep.subr.bf16.mxu0 0
    %1182 = vmatpush1.bf16.msra.mxu0 0
    %1183 = vmatprep.subr.bf16.mxu0 0
    %1184 = vmatpush1.bf16.msra.mxu0 0
    %1185 = vmatprep.subr.bf16.mxu0 0
    %1186 = vmatpush1.bf16.msra.mxu0 0
    %1187 = vmatprep.subr.bf16.mxu0 0
    %1188 = vmatpush1.bf16.msra.mxu0 0
    %1189 = vmatprep.subr.bf16.mxu0 0
    %1190 = vmatpush1.bf16.msra.mxu0 0
    %1191 = vmatprep.subr.bf16.mxu0 0
    %1192 = vmatpush1.bf16.msra.mxu0 0
    %1193 = vmatprep.subr.bf16.mxu0 0
    %1194 = vmatpush1.bf16.msra.mxu0 0
    %1195 = vmatprep.subr.bf16.mxu0 0
    %1196 = vmatpush1.bf16.msra.mxu0 0
    %1197 = vmatprep.subr.bf16.mxu0 0
    %1198 = vmatpush1.bf16.msra.mxu0 0
    %1199 = vmatprep.subr.bf16.mxu0 0
    %1200 = vmatpush1.bf16.msra.mxu0 0
    %1201 = vmatprep.subr.bf16.mxu0 0
    %1202 = vmatpush1.bf16.msra.mxu0 0
    %1203 = vmatprep.mubr.bf16.mxu0 0
    %1204 = vmatmul.mubr.bf16.gmra.mrb[0].mxu0 %v1125
    %v1205 = vpop.f32.mrb[0].mxu0
    %v1206 = vadd.f32 0.0, %v1205
    %v1207 = vpop.f32.mrb[0].mxu0
    %v1208 = vpop.f32.mrb[0].mxu0
    %v1209 = vadd.f32 0.0, %v1208
    %v1210 = vpop.f32.mrb[0].mxu0
    %1211 = vdwg.mxu0
    %v1212 = vsub.f32 %v1168, %v1206
    %v1213 = vsub.f32 %v1169, %v1209
    %v1214 = vmul.f32 %v1212, 2.0
    %v1215 = vmul.f32 %v1213, 2.0
    %v1216 = vsub.f32 %v1214, %v937
    %v1217 = vsub.f32 %v1215, %v938
    %v1218 = vpack.c.bf16 %v1217, %v1216
    %1219 = vmatprep.subr.bf16.mxu0 0
    %1220 = vmatpush1.bf16.msra.mxu0 %v1218
    %1221 = vmatprep.subr.bf16.mxu0 0
    %1222 = vmatpush1.bf16.msra.mxu0 0
    %1223 = vmatprep.subr.bf16.mxu0 0
    %1224 = vmatpush1.bf16.msra.mxu0 0
    %1225 = vmatprep.subr.bf16.mxu0 0
    %1226 = vmatpush1.bf16.msra.mxu0 0
    %1227 = vmatprep.subr.bf16.mxu0 0
    %1228 = vmatpush1.bf16.msra.mxu0 0
    %1229 = vmatprep.subr.bf16.mxu0 0
    %1230 = vmatpush1.bf16.msra.mxu0 0
    %1231 = vmatprep.subr.bf16.mxu0 0
    %1232 = vmatpush1.bf16.msra.mxu0 0
    %1233 = vmatprep.subr.bf16.mxu0 0
    %1234 = vmatpush1.bf16.msra.mxu0 0
    %1235 = vmatprep.subr.bf16.mxu0 0
    %1236 = vmatpush1.bf16.msra.mxu0 0
    %1237 = vmatprep.subr.bf16.mxu0 0
    %1238 = vmatpush1.bf16.msra.mxu0 0
    %1239 = vmatprep.subr.bf16.mxu0 0
    %1240 = vmatpush1.bf16.msra.mxu0 0
    %1241 = vmatprep.subr.bf16.mxu0 0
    %1242 = vmatpush1.bf16.msra.mxu0 0
    %1243 = vmatprep.subr.bf16.mxu0 0
    %1244 = vmatpush1.bf16.msra.mxu0 0
    %1245 = vmatprep.subr.bf16.mxu0 0
    %1246 = vmatpush1.bf16.msra.mxu0 0
    %1247 = vmatprep.subr.bf16.mxu0 0
    %1248 = vmatpush1.bf16.msra.mxu0 0
    %1249 = vmatprep.subr.bf16.mxu0 0
    %1250 = vmatpush1.bf16.msra.mxu0 0
    %1251 = vmatprep.mubr.bf16.mxu0 0
    %1252 = vmatmul.mubr.bf16.gmra.mrb[0].mxu0 %v1125
    %v1253 = vpop.f32.mrb[0].mxu0
    %v1254 = vadd.f32 0.0, %v1253
    %v1255 = vpop.f32.mrb[0].mxu0
    %v1256 = vpop.f32.mrb[0].mxu0
    %v1257 = vadd.f32 0.0, %v1256
    %v1258 = vpop.f32.mrb[0].mxu0
    %1259 = vdwg.mxu0
    %v1260 = vsub.f32 %v1216, %v1254
    %v1261 = vsub.f32 %v1217, %v1257
    %v1262 = vmul.f32 %v1260, 2.0
    %v1263 = vmul.f32 %v1261, 2.0
    %v1264 = vsub.f32 %v1262, %v1168
    %v1265 = vsub.f32 %v1263, %v1169
    %v1266 = vpack.c.bf16 %v1265, %v1264
    %1267 = vmatprep.subr.bf16.mxu0 0
    %1268 = vmatpush1.bf16.msra.mxu0 %v1266
    %1269 = vmatprep.subr.bf16.mxu0 0
    %1270 = vmatpush1.bf16.msra.mxu0 0
    %1271 = vmatprep.subr.bf16.mxu0 0
    %1272 = vmatpush1.bf16.msra.mxu0 0
    %1273 = vmatprep.subr.bf16.mxu0 0
    %1274 = vmatpush1.bf16.msra.mxu0 0
    %1275 = vmatprep.subr.bf16.mxu0 0
    %1276 = vmatpush1.bf16.msra.mxu0 0
    %1277 = vmatprep.subr.bf16.mxu0 0
    %1278 = vmatpush1.bf16.msra.mxu0 0
    %1279 = vmatprep.subr.bf16.mxu0 0
    %1280 = vmatpush1.bf16.msra.mxu0 0
    %1281 = vmatprep.subr.bf16.mxu0 0
    %1282 = vmatpush1.bf16.msra.mxu0 0
    %1283 = vmatprep.subr.bf16.mxu0 0
    %1284 = vmatpush1.bf16.msra.mxu0 0
    %1285 = vmatprep.subr.bf16.mxu0 0
    %1286 = vmatpush1.bf16.msra.mxu0 0
    %1287 = vmatprep.subr.bf16.mxu0 0
    %1288 = vmatpush1.bf16.msra.mxu0 0
    %1289 = vmatprep.subr.bf16.mxu0 0
    %1290 = vmatpush1.bf16.msra.mxu0 0
    %1291 = vmatprep.subr.bf16.mxu0 0
    %1292 = vmatpush1.bf16.msra.mxu0 0
    %1293 = vmatprep.subr.bf16.mxu0 0
    %1294 = vmatpush1.bf16.msra.mxu0 0
    %1295 = vmatprep.subr.bf16.mxu0 0
    %1296 = vmatpush1.bf16.msra.mxu0 0
    %1297 = vmatprep.subr.bf16.mxu0 0
    %1298 = vmatpush1.bf16.msra.mxu0 0
    %1299 = vmatprep.mubr.bf16.mxu0 0
    %1300 = vmatmul.mubr.bf16.gmra.mrb[0].mxu0 %v1125
    %v1301 = vpop.f32.mrb[0].mxu0
    %v1302 = vadd.f32 0.0, %v1301
    %v1303 = vpop.f32.mrb[0].mxu0
    %v1304 = vpop.f32.mrb[0].mxu0
    %v1305 = vadd.f32 0.0, %v1304
    %v1306 = vpop.f32.mrb[0].mxu0
    %1307 = vdwg.mxu0
    %v1308 = vsub.f32 %v1264, %v1302
    %v1309 = vsub.f32 %v1265, %v1305
    %v1310 = vmul.f32 %v1308, 2.0
    %v1311 = vmul.f32 %v1309, 2.0
    %v1312 = vsub.f32 %v1310, %v1216
    %v1313 = vsub.f32 %v1311, %v1217
    %v1314 = vpack.c.bf16 %v1313, %v1312
    %1315 = vmatprep.subr.bf16.mxu0 0
    %1316 = vmatpush1.bf16.msra.mxu0 %v1314
    %1317 = vmatprep.subr.bf16.mxu0 0
    %1318 = vmatpush1.bf16.msra.mxu0 0
    %1319 = vmatprep.subr.bf16.mxu0 0
    %1320 = vmatpush1.bf16.msra.mxu0 0
    %1321 = vmatprep.subr.bf16.mxu0 0
    %1322 = vmatpush1.bf16.msra.mxu0 0
    %1323 = vmatprep.subr.bf16.mxu0 0
    %1324 = vmatpush1.bf16.msra.mxu0 0
    %1325 = vmatprep.subr.bf16.mxu0 0
    %1326 = vmatpush1.bf16.msra.mxu0 0
    %1327 = vmatprep.subr.bf16.mxu0 0
    %1328 = vmatpush1.bf16.msra.mxu0 0
    %1329 = vmatprep.subr.bf16.mxu0 0
    %1330 = vmatpush1.bf16.msra.mxu0 0
    %1331 = vmatprep.subr.bf16.mxu0 0
    %1332 = vmatpush1.bf16.msra.mxu0 0
    %1333 = vmatprep.subr.bf16.mxu0 0
    %1334 = vmatpush1.bf16.msra.mxu0 0
    %1335 = vmatprep.subr.bf16.mxu0 0
    %1336 = vmatpush1.bf16.msra.mxu0 0
    %1337 = vmatprep.subr.bf16.mxu0 0
    %1338 = vmatpush1.bf16.msra.mxu0 0
    %1339 = vmatprep.subr.bf16.mxu0 0
    %1340 = vmatpush1.bf16.msra.mxu0 0
    %1341 = vmatprep.subr.bf16.mxu0 0
    %1342 = vmatpush1.bf16.msra.mxu0 0
    %1343 = vmatprep.subr.bf16.mxu0 0
    %1344 = vmatpush1.bf16.msra.mxu0 0
    %1345 = vmatprep.subr.bf16.mxu0 0
    %1346 = vmatpush1.bf16.msra.mxu0 0
    %1347 = vmatprep.mubr.bf16.mxu0 0
    %1348 = vmatmul.mubr.bf16.gmra.mrb[0].mxu0 %v1125
    %v1349 = vpop.f32.mrb[0].mxu0
    %v1350 = vadd.f32 0.0, %v1349
    %v1351 = vpop.f32.mrb[0].mxu0
    %v1352 = vpop.f32.mrb[0].mxu0
    %v1353 = vadd.f32 0.0, %v1352
    %v1354 = vpop.f32.mrb[0].mxu0
    %1355 = vdwg.mxu0
    %v1356 = vsub.f32 %v1312, %v1350
    %v1357 = vsub.f32 %v1313, %v1353
    %v1358 = vmul.f32 %v1356, 2.0
    %v1359 = vmul.f32 %v1357, 2.0
    %v1360 = vsub.f32 %v1358, %v1264
    %v1361 = vsub.f32 %v1359, %v1265
    %1364 = vrot.lane.b32.xlu0 %v1168, 6
    %v1365 = vpop.permute.xlu0 %1364
    %1366 = vrot.lane.b32.xlu0 %v1169, 6
    %v1367 = vpop.permute.xlu0 %1366
    %1372 = vrot.lane.b32.xlu0 %v1216, 12
    %v1373 = vpop.permute.xlu0 %1372
    %1374 = vrot.lane.b32.xlu0 %v1217, 12
    %v1375 = vpop.permute.xlu0 %1374
    %1380 = vrot.lane.b32.xlu0 %v1264, 18
    %v1381 = vpop.permute.xlu0 %1380
    %1382 = vrot.lane.b32.xlu0 %v1265, 18
    %v1383 = vpop.permute.xlu0 %1382
    %1388 = vrot.lane.b32.xlu0 %v1312, 24
    %v1389 = vpop.permute.xlu0 %1388
    %1390 = vrot.lane.b32.xlu0 %v1313, 24
    %v1391 = vpop.permute.xlu0 %1390
    %1396 = vrot.lane.b32.xlu0 %v1360, 30
    %v1397 = vpop.permute.xlu0 %1396
    %1398 = vrot.lane.b32.xlu0 %v1361, 30
    %v1399 = vpop.permute.xlu0 %1398
    %v1402 = vsel %vm42, %v937, %v1365
    %v1403 = vsel %vm42, %v938, %v1367
    %v1404 = vsel %vm507, %v1402, %v1373
    %v1405 = vsel %vm507, %v1403, %v1375
    %v1406 = vsel %vm510, %v1404, %v1381
    %v1407 = vsel %vm510, %v1405, %v1383
    %v1408 = vsel %vm513, %v1406, %v1389
    %v1409 = vsel %vm513, %v1407, %v1391
    %v1410 = vsel %vm516, %v1408, %v1397
    %v1411 = vsel %vm516, %v1409, %v1399
    %v1413 = vsel %vm531, %v1410, 0
    %v1416 = vsel %vm531, %v1411, 0
    %1418 = vmatprep.subr.mxu0 0.0
    %1419 = vmatpush1.msra.mxu0 %v519
    %1420 = vmatprep.subr.mxu0 0.0
    %1421 = vmatpush1.msra.mxu0 %v520
    %1422 = vmatprep.subr.mxu0 0.0
    %1423 = vmatpush1.msra.mxu0 %v521
    %1424 = vmatprep.subr.mxu0 0.0
    %1425 = vmatpush1.msra.mxu0 %v522
    %1426 = vmatprep.subr.mxu0 0.0
    %1427 = vmatpush1.msra.mxu0 %v540
    %1428 = vmatprep.subr.mxu0 0.0
    %1429 = vmatpush1.msra.mxu0 0.0
    %1430 = vmatprep.subr.mxu0 0.0
    %1431 = vmatpush1.msra.mxu0 0.0
    %1432 = vmatprep.subr.mxu0 0.0
    %1433 = vmatpush1.msra.mxu0 0.0
    %1434 = vmatprep.subr.mxu0 0.0
    %1435 = vmatpush1.msra.mxu0 0.0
    %1436 = vmatprep.subr.mxu0 0.0
    %1437 = vmatpush1.msra.mxu0 0.0
    %1438 = vmatprep.subr.mxu0 0.0
    %1439 = vmatpush1.msra.mxu0 0.0
    %1440 = vmatprep.subr.mxu0 0.0
    %1441 = vmatpush1.msra.mxu0 0.0
    %1442 = vmatprep.subr.mxu0 0.0
    %1443 = vmatpush1.msra.mxu0 0.0
    %1444 = vmatprep.subr.mxu0 0.0
    %1445 = vmatpush1.msra.mxu0 0.0
    %1446 = vmatprep.subr.mxu0 0.0
    %1447 = vmatpush1.msra.mxu0 0.0
    %1448 = vmatprep.subr.mxu0 0.0
    %1449 = vmatpush1.msra.mxu0 0.0
    %1450 = vmatprep.subr.mxu0 0.0
    %1451 = vmatpush1.msra.mxu0 0.0
    %1452 = vmatprep.subr.mxu0 0.0
    %1453 = vmatpush1.msra.mxu0 0.0
    %1454 = vmatprep.subr.mxu0 0.0
    %1455 = vmatpush1.msra.mxu0 0.0
    %1456 = vmatprep.subr.mxu0 0.0
    %1457 = vmatpush1.msra.mxu0 0.0
    %1458 = vmatprep.subr.mxu0 0.0
    %1459 = vmatpush1.msra.mxu0 0.0
    %1460 = vmatprep.subr.mxu0 0.0
    %1461 = vmatpush1.msra.mxu0 0.0
    %1462 = vmatprep.subr.mxu0 0.0
    %1463 = vmatpush1.msra.mxu0 0.0
    %1464 = vmatprep.subr.mxu0 0.0
    %1465 = vmatpush1.msra.mxu0 0.0
    %1466 = vmatprep.subr.mxu0 0.0
    %1467 = vmatpush1.msra.mxu0 0.0
    %1468 = vmatprep.subr.mxu0 0.0
    %1469 = vmatpush1.msra.mxu0 0.0
    %1470 = vmatprep.subr.mxu0 0.0
    %1471 = vmatpush1.msra.mxu0 0.0
    %1472 = vmatprep.subr.mxu0 0.0
    %1473 = vmatpush1.msra.mxu0 0.0
    %1474 = vmatprep.subr.mxu0 0.0
    %1475 = vmatpush1.msra.mxu0 0.0
    %1476 = vmatprep.subr.mxu0 0.0
    %1477 = vmatpush1.msra.mxu0 0.0
    %1478 = vmatprep.subr.mxu0 0.0
    %1479 = vmatpush1.msra.mxu0 0.0
    %1480 = vmatprep.subr.mxu0 0.0
    %1481 = vmatpush1.msra.mxu0 0.0
    %1482 = vmatprep.mubr.f32.mxu0 0.0
    %1483 = vmatmul.mubr.f32.gmra.mrb[0].mxu0 %v1413
    %v1484 = vpop.f32.mrb[0].mxu0
    %v1485 = vadd.f32 %v529, %v1484
    %v1486 = vpop.f32.mrb[0].mxu0
    %1487 = vmatprep.mubr.f32.mxu0 0.0
    %1488 = vmatmul.mubr.f32.gmra.mrb[0].mxu0 %v1416
    %v1489 = vpop.f32.mrb[0].mxu0
    %v1490 = vadd.f32 %v529, %v1489
    %v1491 = vpop.f32.mrb[0].mxu0
    %1492 = vdwg.mxu0
    %v1493 = vmax.f32 %v1485, 0.0
    %v1494 = vmax.f32 %v1490, 0.0
    %v1495 = vpack.c.bf16 %v1494, %v1493
    %1496 = vmatprep.subr.bf16.mxu0 0
    %1497 = vmatpush1.bf16.msra.mxu0 %v1495
    %1498 = vmatprep.subr.bf16.mxu0 0
    %1499 = vmatpush1.bf16.msra.mxu0 0
    %1500 = vmatprep.subr.bf16.mxu0 0
    %1501 = vmatpush1.bf16.msra.mxu0 0
    %1502 = vmatprep.subr.bf16.mxu0 0
    %1503 = vmatpush1.bf16.msra.mxu0 0
    %1504 = vmatprep.subr.bf16.mxu0 0
    %1505 = vmatpush1.bf16.msra.mxu0 0
    %1506 = vmatprep.subr.bf16.mxu0 0
    %1507 = vmatpush1.bf16.msra.mxu0 0
    %1508 = vmatprep.subr.bf16.mxu0 0
    %1509 = vmatpush1.bf16.msra.mxu0 0
    %1510 = vmatprep.subr.bf16.mxu0 0
    %1511 = vmatpush1.bf16.msra.mxu0 0
    %1512 = vmatprep.subr.bf16.mxu0 0
    %1513 = vmatpush1.bf16.msra.mxu0 0
    %1514 = vmatprep.subr.bf16.mxu0 0
    %1515 = vmatpush1.bf16.msra.mxu0 0
    %1516 = vmatprep.subr.bf16.mxu0 0
    %1517 = vmatpush1.bf16.msra.mxu0 0
    %1518 = vmatprep.subr.bf16.mxu0 0
    %1519 = vmatpush1.bf16.msra.mxu0 0
    %1520 = vmatprep.subr.bf16.mxu0 0
    %1521 = vmatpush1.bf16.msra.mxu0 0
    %1522 = vmatprep.subr.bf16.mxu0 0
    %1523 = vmatpush1.bf16.msra.mxu0 0
    %1524 = vmatprep.subr.bf16.mxu0 0
    %1525 = vmatpush1.bf16.msra.mxu0 0
    %1526 = vmatprep.subr.bf16.mxu0 0
    %1527 = vmatpush1.bf16.msra.mxu0 0
    %1528 = vmatprep.mubr.bf16.mxu0 0
    %1529 = vmatmul.mubr.bf16.gmra.mrb[0].mxu0 %v1125
    %v1530 = vpop.f32.mrb[0].mxu0
    %v1531 = vadd.f32 0.0, %v1530
    %v1532 = vpop.f32.mrb[0].mxu0
    %v1533 = vpop.f32.mrb[0].mxu0
    %v1534 = vadd.f32 0.0, %v1533
    %v1535 = vpop.f32.mrb[0].mxu0
    %1536 = vdwg.mxu0
    %v1537 = vsub.f32 %v1493, %v1531
    %v1538 = vsub.f32 %v1494, %v1534
    %v1539 = vpack.c.bf16 %v1538, %v1537
    %1540 = vxpose.xlu0.c.b16.start [1/8] %v1495, 128
    %1541 = vxpose.xlu0.c.b16.cont [2/8] 0, 128
    %1542 = vxpose.xlu0.c.b16.cont [3/8] 0, 128
    %1543 = vxpose.xlu0.c.b16.cont [4/8] 0, 128
    %1544 = vxpose.xlu0.c.b16.cont [5/8] 0, 128
    %1545 = vxpose.xlu0.c.b16.cont [6/8] 0, 128
    %1546 = vxpose.xlu0.c.b16.cont [7/8] 0, 128
    %1547 = vxpose.xlu0.c.b16.end [8/8] 0, 128
    %v1548 = vpop.trf.xlu0
    %v1549 = vpop.trf.xlu0
    %v1550 = vpop.trf.xlu0
    %v1551 = vpop.trf.xlu0
    %v1552 = vpop.trf.xlu0
    %v1553 = vpop.trf.xlu0
    %v1554 = vpop.trf.xlu0
    %v1555 = vpop.trf.xlu0
    %v1557 = vsel %vm176, %v1548, 0
    %v1560 = vsel %vm176, %v1549, 0
    %v1563 = vsel %vm176, %v1550, 0
    %v1566 = vsel %vm176, %v1551, 0
    %v1569 = vsel %vm176, %v1552, 0
    %v1572 = vsel %vm176, %v1553, 0
    %v1575 = vsel %vm176, %v1554, 0
    %v1578 = vsel %vm176, %v1555, 0
    %1580 = vmatprep.subr.bf16.mxu0 0
    %1581 = vmatpush1.bf16.msra.mxu0 %v1539
    %1582 = vmatprep.subr.bf16.mxu0 0
    %1583 = vmatpush1.bf16.msra.mxu0 0
    %1584 = vmatprep.subr.bf16.mxu0 0
    %1585 = vmatpush1.bf16.msra.mxu0 0
    %1586 = vmatprep.subr.bf16.mxu0 0
    %1587 = vmatpush1.bf16.msra.mxu0 0
    %1588 = vmatprep.subr.bf16.mxu0 0
    %1589 = vmatpush1.bf16.msra.mxu0 0
    %1590 = vmatprep.subr.bf16.mxu0 0
    %1591 = vmatpush1.bf16.msra.mxu0 0
    %1592 = vmatprep.subr.bf16.mxu0 0
    %1593 = vmatpush1.bf16.msra.mxu0 0
    %1594 = vmatprep.subr.bf16.mxu0 0
    %1595 = vmatpush1.bf16.msra.mxu0 0
    %1596 = vmatprep.subr.bf16.mxu0 0
    %1597 = vmatpush1.bf16.msra.mxu0 0
    %1598 = vmatprep.subr.bf16.mxu0 0
    %1599 = vmatpush1.bf16.msra.mxu0 0
    %1600 = vmatprep.subr.bf16.mxu0 0
    %1601 = vmatpush1.bf16.msra.mxu0 0
    %1602 = vmatprep.subr.bf16.mxu0 0
    %1603 = vmatpush1.bf16.msra.mxu0 0
    %1604 = vmatprep.subr.bf16.mxu0 0
    %1605 = vmatpush1.bf16.msra.mxu0 0
    %1606 = vmatprep.subr.bf16.mxu0 0
    %1607 = vmatpush1.bf16.msra.mxu0 0
    %1608 = vmatprep.subr.bf16.mxu0 0
    %1609 = vmatpush1.bf16.msra.mxu0 0
    %1610 = vmatprep.subr.bf16.mxu0 0
    %1611 = vmatpush1.bf16.msra.mxu0 0
    %1612 = vmatprep.mubr.bf16.mxu0 0
    %1613 = vmatmul.mubr.bf16.gmra.mrb[0].mxu0 %v1557
    %v1614 = vpop.f32.mrb[0].mxu0
    %v1615 = vadd.f32 0.0, %v1614
    %v1616 = vpop.f32.mrb[0].mxu0
    %v1617 = vpop.f32.mrb[0].mxu0
    %v1618 = vadd.f32 0.0, %v1617
    %v1619 = vpop.f32.mrb[0].mxu0
    %1620 = vmatprep.mubr.bf16.mxu0 0
    %1621 = vmatmul.mubr.bf16.gmra.mrb[0].mxu0 %v1560
    %v1622 = vpop.f32.mrb[0].mxu0
    %v1623 = vadd.f32 0.0, %v1622
    %v1624 = vpop.f32.mrb[0].mxu0
    %v1625 = vpop.f32.mrb[0].mxu0
    %v1626 = vadd.f32 0.0, %v1625
    %v1627 = vpop.f32.mrb[0].mxu0
    %1628 = vmatprep.mubr.bf16.mxu0 0
    %1629 = vmatmul.mubr.bf16.gmra.mrb[0].mxu0 %v1563
    %v1630 = vpop.f32.mrb[0].mxu0
    %v1631 = vadd.f32 0.0, %v1630
    %v1632 = vpop.f32.mrb[0].mxu0
    %v1633 = vpop.f32.mrb[0].mxu0
    %v1634 = vadd.f32 0.0, %v1633
    %v1635 = vpop.f32.mrb[0].mxu0
    %1636 = vmatprep.mubr.bf16.mxu0 0
    %1637 = vmatmul.mubr.bf16.gmra.mrb[0].mxu0 %v1566
    %v1638 = vpop.f32.mrb[0].mxu0
    %v1639 = vadd.f32 0.0, %v1638
    %v1640 = vpop.f32.mrb[0].mxu0
    %v1641 = vpop.f32.mrb[0].mxu0
    %v1642 = vadd.f32 0.0, %v1641
    %v1643 = vpop.f32.mrb[0].mxu0
    %1644 = vmatprep.mubr.bf16.mxu0 0
    %1645 = vmatmul.mubr.bf16.gmra.mrb[0].mxu0 %v1569
    %v1646 = vpop.f32.mrb[0].mxu0
    %v1647 = vadd.f32 0.0, %v1646
    %v1648 = vpop.f32.mrb[0].mxu0
    %v1649 = vpop.f32.mrb[0].mxu0
    %v1650 = vadd.f32 0.0, %v1649
    %v1651 = vpop.f32.mrb[0].mxu0
    %1652 = vmatprep.mubr.bf16.mxu0 0
    %1653 = vmatmul.mubr.bf16.gmra.mrb[0].mxu0 %v1572
    %v1654 = vpop.f32.mrb[0].mxu0
    %v1655 = vadd.f32 0.0, %v1654
    %v1656 = vpop.f32.mrb[0].mxu0
    %v1657 = vpop.f32.mrb[0].mxu0
    %v1658 = vadd.f32 0.0, %v1657
    %v1659 = vpop.f32.mrb[0].mxu0
    %1660 = vmatprep.mubr.bf16.mxu0 0
    %1661 = vmatmul.mubr.bf16.gmra.mrb[0].mxu0 %v1575
    %v1662 = vpop.f32.mrb[0].mxu0
    %v1663 = vadd.f32 0.0, %v1662
    %v1664 = vpop.f32.mrb[0].mxu0
    %v1665 = vpop.f32.mrb[0].mxu0
    %v1666 = vadd.f32 0.0, %v1665
    %v1667 = vpop.f32.mrb[0].mxu0
    %1668 = vmatprep.mubr.bf16.mxu0 0
    %1669 = vmatmul.mubr.bf16.gmra.mrb[0].mxu0 %v1578
    %v1670 = vpop.f32.mrb[0].mxu0
    %v1671 = vadd.f32 0.0, %v1670
    %v1672 = vpop.f32.mrb[0].mxu0
    %v1673 = vpop.f32.mrb[0].mxu0
    %v1674 = vadd.f32 0.0, %v1673
    %v1675 = vpop.f32.mrb[0].mxu0
    %1676 = vdwg.mxu0
    %v1677 = vmul.f32 %v1615, %v1615
    %v1678 = vmul.f32 %v1618, %v1618
    %v1679 = vmul.f32 %v1623, %v1623
    %v1680 = vmul.f32 %v1626, %v1626
    %v1681 = vmul.f32 %v1631, %v1631
    %v1682 = vmul.f32 %v1634, %v1634
    %v1683 = vmul.f32 %v1639, %v1639
    %v1684 = vmul.f32 %v1642, %v1642
    %v1685 = vmul.f32 %v1647, %v1647
    %v1686 = vmul.f32 %v1650, %v1650
    %v1687 = vmul.f32 %v1655, %v1655
    %v1688 = vmul.f32 %v1658, %v1658
    %v1689 = vmul.f32 %v1663, %v1663
    %v1690 = vmul.f32 %v1666, %v1666
    %v1691 = vmul.f32 %v1671, %v1671
    %v1692 = vmul.f32 %v1674, %v1674
    %v1693 = vadd.f32 %v1677, %v1678
    %v1694 = vadd.f32 %v1693, %v1679
    %v1695 = vadd.f32 %v1694, %v1680
    %v1696 = vadd.f32 %v1695, %v1681
    %v1697 = vadd.f32 %v1696, %v1682
    %v1698 = vadd.f32 %v1697, %v1683
    %v1699 = vadd.f32 %v1698, %v1684
    %v1700 = vadd.f32 %v1699, %v1685
    %v1701 = vadd.f32 %v1700, %v1686
    %v1702 = vadd.f32 %v1701, %v1687
    %v1703 = vadd.f32 %v1702, %v1688
    %v1704 = vadd.f32 %v1703, %v1689
    %v1705 = vadd.f32 %v1704, %v1690
    %v1706 = vadd.f32 %v1705, %v1691
    %v1707 = vadd.f32 %v1706, %v1692
    %1708 = vadd.xlane.f32.xlu0 %v1707
    %v1709 = vpop.xlane.xlu0 %1708
    %v1710 = vrot.slane %v1709, 4
    %v1711 = vadd.f32 %v1709, %v1710
    %v1712 = vrot.slane %v1711, 2
    %v1713 = vadd.f32 %v1711, %v1712
    %v1714 = vrot.slane %v1713, 1
    %v1715 = vadd.f32 %v1713, %v1714
    %s1716 = vtos %v1715
    %v1717 = vstv %s1716
    %v1718 = vmax.f32 %v1493, %v1494
    %v1719 = vrot.slane %v1718, 4
    %v1720 = vmax.f32 %v1718, %v1719
    %v1721 = vrot.slane %v1720, 2
    %v1722 = vmax.f32 %v1720, %v1721
    %v1723 = vrot.slane %v1722, 1
    %v1724 = vmax.f32 %v1722, %v1723
    %1725 = vmatprep.subr.mxu0 0.0
    %1726 = vmatpush1.msra.mxu0 %v849
    %1727 = vmatprep.subr.mxu0 0.0
    %1728 = vmatpush1.msra.mxu0 %v850
    %1729 = vmatprep.subr.mxu0 0.0
    %1730 = vmatpush1.msra.mxu0 %v851
    %1731 = vmatprep.subr.mxu0 0.0
    %1732 = vmatpush1.msra.mxu0 %v852
    %1733 = vmatprep.subr.mxu0 0.0
    %1734 = vmatpush1.msra.mxu0 %v853
    %1735 = vmatprep.subr.mxu0 0.0
    %1736 = vmatpush1.msra.mxu0 %v854
    %1737 = vmatprep.subr.mxu0 0.0
    %1738 = vmatpush1.msra.mxu0 %v855
    %1739 = vmatprep.subr.mxu0 0.0
    %1740 = vmatpush1.msra.mxu0 %v856
    %1741 = vmatprep.subr.mxu0 0.0
    %1742 = vmatpush1.msra.mxu0 %v857
    %1743 = vmatprep.subr.mxu0 0.0
    %1744 = vmatpush1.msra.mxu0 %v858
    %1745 = vmatprep.subr.mxu0 0.0
    %1746 = vmatpush1.msra.mxu0 %v859
    %1747 = vmatprep.subr.mxu0 0.0
    %1748 = vmatpush1.msra.mxu0 %v860
    %1749 = vmatprep.subr.mxu0 0.0
    %1750 = vmatpush1.msra.mxu0 %v861
    %1751 = vmatprep.subr.mxu0 0.0
    %1752 = vmatpush1.msra.mxu0 %v862
    %1753 = vmatprep.subr.mxu0 0.0
    %1754 = vmatpush1.msra.mxu0 %v863
    %1755 = vmatprep.subr.mxu0 0.0
    %1756 = vmatpush1.msra.mxu0 %v864
    %1757 = vmatprep.subr.mxu0 0.0
    %1758 = vmatpush1.msra.mxu0 0.0
    %1759 = vmatprep.subr.mxu0 0.0
    %1760 = vmatpush1.msra.mxu0 0.0
    %1761 = vmatprep.subr.mxu0 0.0
    %1762 = vmatpush1.msra.mxu0 0.0
    %1763 = vmatprep.subr.mxu0 0.0
    %1764 = vmatpush1.msra.mxu0 0.0
    %1765 = vmatprep.subr.mxu0 0.0
    %1766 = vmatpush1.msra.mxu0 0.0
    %1767 = vmatprep.subr.mxu0 0.0
    %1768 = vmatpush1.msra.mxu0 0.0
    %1769 = vmatprep.subr.mxu0 0.0
    %1770 = vmatpush1.msra.mxu0 0.0
    %1771 = vmatprep.subr.mxu0 0.0
    %1772 = vmatpush1.msra.mxu0 0.0
    %1773 = vmatprep.subr.mxu0 0.0
    %1774 = vmatpush1.msra.mxu0 0.0
    %1775 = vmatprep.subr.mxu0 0.0
    %1776 = vmatpush1.msra.mxu0 0.0
    %1777 = vmatprep.subr.mxu0 0.0
    %1778 = vmatpush1.msra.mxu0 0.0
    %1779 = vmatprep.subr.mxu0 0.0
    %1780 = vmatpush1.msra.mxu0 0.0
    %1781 = vmatprep.subr.mxu0 0.0
    %1782 = vmatpush1.msra.mxu0 0.0
    %1783 = vmatprep.subr.mxu0 0.0
    %1784 = vmatpush1.msra.mxu0 0.0
    %1785 = vmatprep.subr.mxu0 0.0
    %1786 = vmatpush1.msra.mxu0 0.0
    %1787 = vmatprep.subr.mxu0 0.0
    %1788 = vmatpush1.msra.mxu0 0.0
    %1789 = vmatprep.mubr.f32.mxu0 0.0
    %1790 = vmatmul.mubr.f32.gmra.mrb[0].mxu0 %v1724
    %v1791 = vpop.f32.mrb[0].mxu0
    %v1792 = vadd.f32 %v865, %v1791
    %v1793 = vpop.f32.mrb[0].mxu0
    %1794 = vdwg.mxu0
    %v1796 = vrot.slane %v1792, 7
    %vm1798 = vcmask 1040384
    %v1799 = vsel %vm1798, %v933, %v1796
    %1800 = vst [vmem:[#allocation5] sm:$0x3] %v1799
    %v1801 = vsel %vm1798, %v841, %v1717
    %vm1802 = vcmask 1024
    %1803 = vst.msk [vmem:[%s6] sm:$0x3] %vm1802, %v1801
    // Predicated region
    $region26: #{tpu_custom_call.1} parent=1 // pred_check
      _
    $region27: #{tpu_custom_call.1} parent=1 // pred_check_branch
      %1805 = sbr.rel (0) target = $region29
    $region28: #{tpu_custom_call.1} parent=1 // pred_region
      %s1807 = ssub.s32 32, 32
      %1808 = vsyncadd [#allocation4], %s1807
      %s1810 = sshll.u32 [#allocation5], 4
      %s1811 = int_to_ptr.vmem [resolvable:$true] %s1810
      %1813 = dma.vmem_to_hbm [thread:$0]  %s1811, 32, %s5, [#allocation4]
    $region29: #{tpu_custom_call.1} parent=1 // pred_fallthru
      _
    // Predicated region
    $region30: #{tpu_custom_call.1} parent=1 // pred_check
      _
    $region31: #{tpu_custom_call.1} parent=1 // pred_check_branch
      %1815 = sbr.rel (0) target = $region33
    $region32: #{tpu_custom_call.1} parent=1 // pred_region
      _
    $region33: #{tpu_custom_call.1} parent=1 // pred_fallthru
      _
    // Predicated region
    $region34: #{tpu_custom_call.1} parent=1 // pred_check
      _
    $region35: #{tpu_custom_call.1} parent=1 // pred_check_branch
      %1817 = sbr.rel (0) target = $region37
    $region36: #{tpu_custom_call.1} parent=1 // pred_region
      %1818 = dma.done [#allocation4], 32
    $region37: #{tpu_custom_call.1} parent=1 // pred_fallthru
      _
    // Predicated region
    $region38: #{tpu_custom_call.1} parent=1 // pred_check
      _
    $region39: #{tpu_custom_call.1} parent=1 // pred_check_branch
      %1820 = sbr.rel (0) target = $region41
    $region40: #{tpu_custom_call.1} parent=1 // pred_region
      _
    $region41: #{tpu_custom_call.1} parent=1 // pred_fallthru
      _
    %1821 = vsyncpa [#allocation3], 1
    %1822 = vsyncpa [#allocation4], 1

</llo_original>
